<compile_context>
chip_gen: v7x
topology: tpu7x:2x2x1
jax: 0.10.0
libtpu: 0.0.40
codegen_flags: <defaults>
</compile_context>

<pallas_src>
import functools

import jax
import jax.numpy as jnp
from jax import lax
from jax.experimental import pallas as pl
from jax.experimental.pallas import tpu as pltpu

_LN_EPS = 1e-5


def _rnmt_decoder_kernel(inp_ref, attn_ref, h0_ref,
                         wc1_ref, wc2_ref,
                         wih_r_ref, wih_z_ref, wih_n_ref,
                         whh_r_ref, whh_z_ref, whh_n_ref,
                         b_emb_ref, b_r_ref, b_z_ref, b_in_ref, b_hn_ref,
                         g_ref, beta_ref,
                         out_ref, hout_ref,
                         h_sc, gi_r_sc, gi_z_sc, gi_n_sc, rnn_sc):
    """One grid step processes a chunk of `chunk_t` time steps.

    inp_ref, attn_ref : (rows, H)  time-major flattened chunk, rows = chunk_t*B
    h0_ref            : (B, H)     initial GRU hidden state
    wc1/wc2           : (H, H)     attn_combine weight, split & transposed
    wih_*/whh_*       : (H, H)     per-gate GRU weights, transposed; gates r,z,n
    b_emb             : (1, H)     attn_combine bias
    b_r, b_z          : (1, H)     b_ih + b_hh, pre-folded per gate
    b_in, b_hn        : (1, H)     input / hidden bias of the n gate
    g, beta           : (1, H)     LayerNorm affine
    out_ref           : (rows, H)
    hout_ref          : (B, H)
    scratch           : h_sc (B,H) carried hidden; gi_*_sc, rnn_sc (rows, H) f32
    """
    B = h0_ref.shape[0]
    H = h0_ref.shape[1]
    rows = rnn_sc.shape[0]
    chunk_t = rows // B

    # ---- init hidden carry on the first T-chunk -----------------------------
    @pl.when(pl.program_id(0) == 0)
    def _():
        h_sc[...] = h0_ref[...].astype(jnp.float32)

    # ---- hoisted pre-pass: all non-recurrent matmuls over the whole chunk ---
    x = inp_ref[...].astype(jnp.float32)            # (rows, H)
    a = attn_ref[...].astype(jnp.float32)           # (rows, H)
    emb = (jnp.dot(x, wc1_ref[...], preferred_element_type=jnp.float32)
           + jnp.dot(a, wc2_ref[...], preferred_element_type=jnp.float32)
           + b_emb_ref[...])                        # (rows, H)

    gi_r_sc[...] = (jnp.dot(emb, wih_r_ref[...], preferred_element_type=jnp.float32)
                    + b_r_ref[...])
    gi_z_sc[...] = (jnp.dot(emb, wih_z_ref[...], preferred_element_type=jnp.float32)
                    + b_z_ref[...])
    gi_n_sc[...] = (jnp.dot(emb, wih_n_ref[...], preferred_element_type=jnp.float32)
                    + b_in_ref[...])

    # ---- hoisted loop-invariant reads ----------------------------------------
    w_r = whh_r_ref[...]
    w_z = whh_z_ref[...]
    w_n = whh_n_ref[...]
    b_hn = b_hn_ref[...]

    # ---- recurrence: only h @ W_hh_{r,z,n} + gates stay on the serial path ---
    def step(t, h):
        start = t * B if isinstance(t, int) else pl.multiple_of(t * B, B)
        row_slice = pl.ds(start, B)
        i_r = gi_r_sc[row_slice, :]
        i_z = gi_z_sc[row_slice, :]
        i_n = gi_n_sc[row_slice, :]
        gh_r = jnp.dot(h, w_r, preferred_element_type=jnp.float32)
        gh_z = jnp.dot(h, w_z, preferred_element_type=jnp.float32)
        gh_n = jnp.dot(h, w_n, preferred_element_type=jnp.float32) + b_hn
        r = jax.nn.sigmoid(i_r + gh_r)
        z = jax.nn.sigmoid(i_z + gh_z)
        n = jnp.tanh(i_n + r * gh_n)
        h_new = (1.0 - z) * n + z * h               # (B, H)
        rnn_sc[row_slice, :] = h_new
        return h_new

    h = h_sc[...]
    if chunk_t <= 32:
        # full static unroll: static slices + maximal scheduler visibility
        for t in range(chunk_t):
            h = step(t, h)
    else:
        h = lax.fori_loop(0, chunk_t, step, h)

    h_sc[...] = h
    hout_ref[...] = h.astype(hout_ref.dtype)

    # ---- post-pass: LayerNorm + affine + residual on the whole chunk slab ---
    rnn = rnn_sc[...]                               # (rows, H) f32
    mu = jnp.mean(rnn, axis=1, keepdims=True)
    var = jnp.mean((rnn - mu) ** 2, axis=1, keepdims=True)
    y = (rnn - mu) * lax.rsqrt(var + _LN_EPS) * g_ref[...] + beta_ref[...]
    # Dropout (eval) = identity; residual add of `inputs`
    out_ref[...] = (y + inp_ref[...].astype(jnp.float32)).astype(out_ref.dtype)


def _pick_chunk_t(T, B, H, itemsize, vmem_budget_bytes=8 << 20):
    """Largest T-chunk (divisor of T) whose working set fits a conservative
    per-chunk VMEM budget and keeps the block row count sublane-aligned."""
    for c in range(T, 0, -1):
        if T % c:
            continue
        rows = c * B
        if c != T and rows % 8 != 0:
            continue
        # inp/attn/out blocks are double-buffered by the pipeline; 4 f32 scratch slabs
        need = rows * H * (3 * 2 * itemsize + 4 * 4)
        if need <= vmem_budget_bytes:
            return c
    return T


def rnmt_plus_decoder_layer(inputs, hidden, cell, attn_outputs, kparams, *,
                            chunk_t=None):
    """inputs/attn_outputs: (B, T, H); hidden/cell: (B, H)."""
    B, T, H = inputs.shape
    if chunk_t is None:
        chunk_t = _pick_chunk_t(T, B, H, jnp.dtype(inputs.dtype).itemsize)
    assert T % chunk_t == 0, "chunk_t must divide T"
    rows = chunk_t * B
    assert chunk_t == T or rows % 8 == 0, "chunk_t*B must be a multiple of 8"

    # time-major flatten: (B, T, H) -> (T*B, H)
    inp2 = jnp.transpose(inputs, (1, 0, 2)).reshape(T * B, H)
    attn2 = jnp.transpose(attn_outputs, (1, 0, 2)).reshape(T * B, H)

    seq_spec = pl.BlockSpec((rows, H), lambda i: (i, 0))
    h_spec = pl.BlockSpec((B, H), lambda i: (0, 0))
    w_spec = pl.BlockSpec((H, H), lambda i: (0, 0))
    v_spec = pl.BlockSpec((1, H), lambda i: (0, 0))

    out2, h_out = pl.pallas_call(
        _rnmt_decoder_kernel,
        grid=(T // chunk_t,),
        out_shape=(jax.ShapeDtypeStruct((T * B, H), inputs.dtype),
                   jax.ShapeDtypeStruct((B, H), hidden.dtype)),
        in_specs=([seq_spec, seq_spec, h_spec]
                  + [w_spec] * 8
                  + [v_spec] * 7),
        out_specs=(seq_spec, h_spec),
        scratch_shapes=[
            pltpu.VMEM((B, H), jnp.float32),      # carried hidden state
            pltpu.VMEM((rows, H), jnp.float32),   # gi_r
            pltpu.VMEM((rows, H), jnp.float32),   # gi_z
            pltpu.VMEM((rows, H), jnp.float32),   # gi_n
            pltpu.VMEM((rows, H), jnp.float32),   # GRU outputs for post-pass LN
        ],
        compiler_params=pltpu.CompilerParams(
            dimension_semantics=("arbitrary",),
            vmem_limit_bytes=32 * 1024 * 1024),
    )(inp2, attn2, hidden,
      kparams["wc1"], kparams["wc2"],
      kparams["wih_r"], kparams["wih_z"], kparams["wih_n"],
      kparams["whh_r"], kparams["whh_z"], kparams["whh_n"],
      kparams["b_emb"], kparams["b_r"], kparams["b_z"],
      kparams["b_in"], kparams["b_hn"],
      kparams["gamma"], kparams["beta"])

    output = jnp.transpose(out2.reshape(T, B, H), (1, 0, 2))   # back to (B,T,H)
    return output, h_out, cell                                  # cell passthrough (GRU)


def make_params(key, hidden_size):
    """Raw PyTorch-shaped parameters (attn_combine Linear, GRU, LayerNorm)."""
    H = hidden_size
    ks = jax.random.split(key, 6)
    u = lambda k, shape: jax.random.uniform(k, shape, jnp.float32, -0.1, 0.1)
    return {
        "w_combine": u(ks[0], (H, 2 * H)),   # Linear weight (out, in)
        "b_combine": u(ks[1], (H,)),
        "w_ih": u(ks[2], (3 * H, H)),        # gate order [r, z, n]
        "w_hh": u(ks[3], (3 * H, H)),
        "b_ih": u(ks[4], (3 * H,)),
        "b_hh": u(ks[5], (3 * H,)),
        "ln_gamma": jnp.ones((H,), jnp.float32),
        "ln_beta": jnp.zeros((H,), jnp.float32),
    }


def prepare_kernel_params(p):
    """Split / transpose / pre-fold raw params into the kernel layout."""
    H = p["ln_gamma"].shape[0]

    def gate(mat_or_vec, g):
        return mat_or_vec[g * H:(g + 1) * H]

    w_ih, w_hh = p["w_ih"], p["w_hh"]
    b_ih, b_hh = p["b_ih"], p["b_hh"]
    return {
        "wc1": p["w_combine"][:, :H].T,           # (H, H)
        "wc2": p["w_combine"][:, H:].T,           # (H, H)
        "wih_r": gate(w_ih, 0).T, "wih_z": gate(w_ih, 1).T, "wih_n": gate(w_ih, 2).T,
        "whh_r": gate(w_hh, 0).T, "whh_z": gate(w_hh, 1).T, "whh_n": gate(w_hh, 2).T,
        "b_emb": p["b_combine"].reshape(1, H),
        "b_r": (gate(b_ih, 0) + gate(b_hh, 0)).reshape(1, H),
        "b_z": (gate(b_ih, 1) + gate(b_hh, 1)).reshape(1, H),
        "b_in": gate(b_ih, 2).reshape(1, H),
        "b_hn": gate(b_hh, 2).reshape(1, H),
        "gamma": p["ln_gamma"].reshape(1, H),
        "beta": p["ln_beta"].reshape(1, H),
    }


def reference(inputs, hidden, cell, attn_outputs, p):
    """Pure-JAX reference of the PyTorch forward (eval mode), raw params."""
    H = inputs.shape[-1]
    cat = jnp.concatenate([inputs, attn_outputs], axis=2)           # (B, T, 2H)
    emb = cat @ p["w_combine"].T + p["b_combine"]                   # (B, T, H)
    emb_tm = jnp.transpose(emb, (1, 0, 2))                          # (T, B, H)

    def gru_step(h, x):
        gi = x @ p["w_ih"].T + p["b_ih"]
        gh = h @ p["w_hh"].T + p["b_hh"]
        i_r, i_z, i_n = gi[:, :H], gi[:, H:2 * H], gi[:, 2 * H:]
        h_r, h_z, h_n = gh[:, :H], gh[:, H:2 * H], gh[:, 2 * H:]
        r = jax.nn.sigmoid(i_r + h_r)
        z = jax.nn.sigmoid(i_z + h_z)
        n = jnp.tanh(i_n + r * h_n)
        h_new = (1.0 - z) * n + z * h
        return h_new, h_new

    h_final, rnn_tm = lax.scan(gru_step, hidden, emb_tm)
    rnn = jnp.transpose(rnn_tm, (1, 0, 2))                          # (B, T, H)
    mu = jnp.mean(rnn, axis=-1, keepdims=True)
    var = jnp.mean((rnn - mu) ** 2, axis=-1, keepdims=True)
    out = (rnn - mu) / jnp.sqrt(var + _LN_EPS) * p["ln_gamma"] + p["ln_beta"]
    out = out + inputs
    return out, h_final, cell


if __name__ == "__main__":
    B, T, H = 2, 8, 32   # batch, seq len, hidden_size (num_heads=4 unused in forward)

    key = jax.random.PRNGKey(0)
    k_in, k_attn, k_h, k_c, k_p = jax.random.split(key, 5)
    inputs = jax.random.normal(k_in, (B, T, H), jnp.float32)
    attn_outputs = jax.random.normal(k_attn, (B, T, H), jnp.float32)
    hidden = jax.random.normal(k_h, (B, H), jnp.float32)
    cell = jax.random.normal(k_c, (B, H), jnp.float32)

    raw_params = make_params(k_p, H)
    kparams = prepare_kernel_params(raw_params)

    # chunk_t=4 -> grid=(2,), exercising the hidden-state carry across chunks.
    fn = jax.jit(functools.partial(rnmt_plus_decoder_layer, chunk_t=4))
    out, h_out, c_out = fn(inputs, hidden, cell, attn_outputs, kparams)
    jax.block_until_ready((out, h_out, c_out))

    ref_out, ref_h, ref_c = reference(inputs, hidden, cell, attn_outputs, raw_params)
    assert out.shape == (B, T, H) and h_out.shape == (B, H) and c_out.shape == (B, H)
    assert jnp.allclose(out, ref_out, atol=1e-4, rtol=1e-4), "output mismatch"
    assert jnp.allclose(h_out, ref_h, atol=1e-4, rtol=1e-4), "hidden mismatch"
    assert jnp.allclose(c_out, ref_c), "cell mismatch"

    print("KERNEL_OK")
</pallas_src>

<mosaic_0001>
module attributes {stable_mosaic.version = 11 : i64} {
  func.func @_rnmt_decoder_kernel(%arg0: i32, %arg1: memref<8x32xf32, #tpu.memory_space<vmem>>, %arg2: memref<8x32xf32, #tpu.memory_space<vmem>>, %arg3: memref<2x32xf32, #tpu.memory_space<vmem>>, %arg4: memref<32x32xf32, #tpu.memory_space<vmem>>, %arg5: memref<32x32xf32, #tpu.memory_space<vmem>>, %arg6: memref<32x32xf32, #tpu.memory_space<vmem>>, %arg7: memref<32x32xf32, #tpu.memory_space<vmem>>, %arg8: memref<32x32xf32, #tpu.memory_space<vmem>>, %arg9: memref<32x32xf32, #tpu.memory_space<vmem>>, %arg10: memref<32x32xf32, #tpu.memory_space<vmem>>, %arg11: memref<32x32xf32, #tpu.memory_space<vmem>>, %arg12: memref<1x32xf32, #tpu.memory_space<vmem>>, %arg13: memref<1x32xf32, #tpu.memory_space<vmem>>, %arg14: memref<1x32xf32, #tpu.memory_space<vmem>>, %arg15: memref<1x32xf32, #tpu.memory_space<vmem>>, %arg16: memref<1x32xf32, #tpu.memory_space<vmem>>, %arg17: memref<1x32xf32, #tpu.memory_space<vmem>>, %arg18: memref<1x32xf32, #tpu.memory_space<vmem>>, %arg19: memref<8x32xf32, #tpu.memory_space<vmem>>, %arg20: memref<2x32xf32, #tpu.memory_space<vmem>>, %arg21: memref<2x32xf32, #tpu.memory_space<vmem>>, %arg22: memref<8x32xf32, #tpu.memory_space<vmem>>, %arg23: memref<8x32xf32, #tpu.memory_space<vmem>>, %arg24: memref<8x32xf32, #tpu.memory_space<vmem>>, %arg25: memref<8x32xf32, #tpu.memory_space<vmem>>) attributes {dimension_semantics = [#tpu.dimension_semantics<arbitrary>], iteration_bounds = array<i64: 2>, scalar_prefetch = 0 : i64, scratch_operands = 5 : i64, tpu.core_type = #tpu.core_type<tc>, window_params = [{transform_indices = @transform_0, window_bounds = array<i64: 8, 32>}, {transform_indices = @transform_1, window_bounds = array<i64: 8, 32>}, {pipeline_mode = #tpu.pipeline_mode<synchronous>, transform_indices = @transform_2, window_bounds = array<i64: 2, 32>}, {pipeline_mode = #tpu.pipeline_mode<synchronous>, transform_indices = @transform_3, window_bounds = array<i64: 32, 32>}, {pipeline_mode = #tpu.pipeline_mode<synchronous>, transform_indices = @transform_4, window_bounds = array<i64: 32, 32>}, {pipeline_mode = #tpu.pipeline_mode<synchronous>, transform_indices = @transform_5, window_bounds = array<i64: 32, 32>}, {pipeline_mode = #tpu.pipeline_mode<synchronous>, transform_indices = @transform_6, window_bounds = array<i64: 32, 32>}, {pipeline_mode = #tpu.pipeline_mode<synchronous>, transform_indices = @transform_7, window_bounds = array<i64: 32, 32>}, {pipeline_mode = #tpu.pipeline_mode<synchronous>, transform_indices = @transform_8, window_bounds = array<i64: 32, 32>}, {pipeline_mode = #tpu.pipeline_mode<synchronous>, transform_indices = @transform_9, window_bounds = array<i64: 32, 32>}, {pipeline_mode = #tpu.pipeline_mode<synchronous>, transform_indices = @transform_10, window_bounds = array<i64: 32, 32>}, {pipeline_mode = #tpu.pipeline_mode<synchronous>, transform_indices = @transform_11, window_bounds = array<i64: 1, 32>}, {pipeline_mode = #tpu.pipeline_mode<synchronous>, transform_indices = @transform_12, window_bounds = array<i64: 1, 32>}, {pipeline_mode = #tpu.pipeline_mode<synchronous>, transform_indices = @transform_13, window_bounds = array<i64: 1, 32>}, {pipeline_mode = #tpu.pipeline_mode<synchronous>, transform_indices = @transform_14, window_bounds = array<i64: 1, 32>}, {pipeline_mode = #tpu.pipeline_mode<synchronous>, transform_indices = @transform_15, window_bounds = array<i64: 1, 32>}, {pipeline_mode = #tpu.pipeline_mode<synchronous>, transform_indices = @transform_16, window_bounds = array<i64: 1, 32>}, {pipeline_mode = #tpu.pipeline_mode<synchronous>, transform_indices = @transform_17, window_bounds = array<i64: 1, 32>}, {transform_indices = @transform_18, window_bounds = array<i64: 8, 32>}, {pipeline_mode = #tpu.pipeline_mode<synchronous>, transform_indices = @transform_19, window_bounds = array<i64: 2, 32>}]} {
    %c0_i32 = arith.constant 0 : i32
    %0 = arith.cmpi eq, %arg0, %c0_i32 : i32
    %1 = arith.extui %0 : i1 to i32
    %c0_i32_0 = arith.constant 0 : i32
    %2 = arith.cmpi ne, %1, %c0_i32_0 : i32
    scf.if %2 {
      %c0_114 = arith.constant 0 : index
      %c0_115 = arith.constant 0 : index
      %182 = vector.load %arg3[%c0_114, %c0_115] : memref<2x32xf32, #tpu.memory_space<vmem>>, vector<2x32xf32>
      %c0_116 = arith.constant 0 : index
      %c0_117 = arith.constant 0 : index
      %183 = vector.load %arg21[%c0_116, %c0_117] : memref<2x32xf32, #tpu.memory_space<vmem>>, vector<2x32xf32>
      tpu.vector_store %arg21[%c0_116, %c0_117], %182 {strides = array<i32>} : memref<2x32xf32, #tpu.memory_space<vmem>>, vector<2x32xf32>,
    } else {
    }
    %c0 = arith.constant 0 : index
    %c0_1 = arith.constant 0 : index
    %3 = vector.load %arg1[%c0, %c0_1] : memref<8x32xf32, #tpu.memory_space<vmem>>, vector<8x32xf32>
    %c0_2 = arith.constant 0 : index
    %c0_3 = arith.constant 0 : index
    %4 = vector.load %arg2[%c0_2, %c0_3] : memref<8x32xf32, #tpu.memory_space<vmem>>, vector<8x32xf32>
    %c0_4 = arith.constant 0 : index
    %c0_5 = arith.constant 0 : index
    %5 = vector.load %arg4[%c0_4, %c0_5] : memref<32x32xf32, #tpu.memory_space<vmem>>, vector<32x32xf32>
    %cst = arith.constant dense<0.000000e+00> : vector<8x32xf32>
    %6 = tpu.matmul %3, %5, %cst {dimension_numbers = #tpu.dot_dimension_numbers<[1], [0], [0], [1], [0, 0, 1, 1], [], []>} : vector<8x32xf32>, vector<32x32xf32>, vector<8x32xf32> -> vector<8x32xf32>
    %c0_6 = arith.constant 0 : index
    %c0_7 = arith.constant 0 : index
    %7 = vector.load %arg5[%c0_6, %c0_7] : memref<32x32xf32, #tpu.memory_space<vmem>>, vector<32x32xf32>
    %cst_8 = arith.constant dense<0.000000e+00> : vector<8x32xf32>
    %8 = tpu.matmul %4, %7, %cst_8 {dimension_numbers = #tpu.dot_dimension_numbers<[1], [0], [0], [1], [0, 0, 1, 1], [], []>} : vector<8x32xf32>, vector<32x32xf32>, vector<8x32xf32> -> vector<8x32xf32>
    %9 = arith.addf %6, %8 : vector<8x32xf32>
    %c0_9 = arith.constant 0 : index
    %c0_10 = arith.constant 0 : index
    %10 = vector.load %arg12[%c0_9, %c0_10] : memref<1x32xf32, #tpu.memory_space<vmem>>, vector<1x32xf32>
    %11 = vector.broadcast %10 : vector<1x32xf32> to vector<8x32xf32>
    %12 = arith.addf %9, %11 : vector<8x32xf32>
    %c0_11 = arith.constant 0 : index
    %c0_12 = arith.constant 0 : index
    %13 = vector.load %arg6[%c0_11, %c0_12] : memref<32x32xf32, #tpu.memory_space<vmem>>, vector<32x32xf32>
    %cst_13 = arith.constant dense<0.000000e+00> : vector<8x32xf32>
    %14 = tpu.matmul %12, %13, %cst_13 {dimension_numbers = #tpu.dot_dimension_numbers<[1], [0], [0], [1], [0, 0, 1, 1], [], []>} : vector<8x32xf32>, vector<32x32xf32>, vector<8x32xf32> -> vector<8x32xf32>
    %c0_14 = arith.constant 0 : index
    %c0_15 = arith.constant 0 : index
    %15 = vector.load %arg13[%c0_14, %c0_15] : memref<1x32xf32, #tpu.memory_space<vmem>>, vector<1x32xf32>
    %16 = vector.broadcast %15 : vector<1x32xf32> to vector<8x32xf32>
    %17 = arith.addf %14, %16 : vector<8x32xf32>
    %c0_16 = arith.constant 0 : index
    %c0_17 = arith.constant 0 : index
    %18 = vector.load %arg22[%c0_16, %c0_17] : memref<8x32xf32, #tpu.memory_space<vmem>>, vector<8x32xf32>
    tpu.vector_store %arg22[%c0_16, %c0_17], %17 {strides = array<i32>} : memref<8x32xf32, #tpu.memory_space<vmem>>, vector<8x32xf32>,
    %c0_18 = arith.constant 0 : index
    %c0_19 = arith.constant 0 : index
    %19 = vector.load %arg7[%c0_18, %c0_19] : memref<32x32xf32, #tpu.memory_space<vmem>>, vector<32x32xf32>
    %cst_20 = arith.constant dense<0.000000e+00> : vector<8x32xf32>
    %20 = tpu.matmul %12, %19, %cst_20 {dimension_numbers = #tpu.dot_dimension_numbers<[1], [0], [0], [1], [0, 0, 1, 1], [], []>} : vector<8x32xf32>, vector<32x32xf32>, vector<8x32xf32> -> vector<8x32xf32>
    %c0_21 = arith.constant 0 : index
    %c0_22 = arith.constant 0 : index
    %21 = vector.load %arg14[%c0_21, %c0_22] : memref<1x32xf32, #tpu.memory_space<vmem>>, vector<1x32xf32>
    %22 = vector.broadcast %21 : vector<1x32xf32> to vector<8x32xf32>
    %23 = arith.addf %20, %22 : vector<8x32xf32>
    %c0_23 = arith.constant 0 : index
    %c0_24 = arith.constant 0 : index
    %24 = vector.load %arg23[%c0_23, %c0_24] : memref<8x32xf32, #tpu.memory_space<vmem>>, vector<8x32xf32>
    tpu.vector_store %arg23[%c0_23, %c0_24], %23 {strides = array<i32>} : memref<8x32xf32, #tpu.memory_space<vmem>>, vector<8x32xf32>,
    %c0_25 = arith.constant 0 : index
    %c0_26 = arith.constant 0 : index
    %25 = vector.load %arg8[%c0_25, %c0_26] : memref<32x32xf32, #tpu.memory_space<vmem>>, vector<32x32xf32>
    %cst_27 = arith.constant dense<0.000000e+00> : vector<8x32xf32>
    %26 = tpu.matmul %12, %25, %cst_27 {dimension_numbers = #tpu.dot_dimension_numbers<[1], [0], [0], [1], [0, 0, 1, 1], [], []>} : vector<8x32xf32>, vector<32x32xf32>, vector<8x32xf32> -> vector<8x32xf32>
    %c0_28 = arith.constant 0 : index
    %c0_29 = arith.constant 0 : index
    %27 = vector.load %arg15[%c0_28, %c0_29] : memref<1x32xf32, #tpu.memory_space<vmem>>, vector<1x32xf32>
    %28 = vector.broadcast %27 : vector<1x32xf32> to vector<8x32xf32>
    %29 = arith.addf %26, %28 : vector<8x32xf32>
    %c0_30 = arith.constant 0 : index
    %c0_31 = arith.constant 0 : index
    %30 = vector.load %arg24[%c0_30, %c0_31] : memref<8x32xf32, #tpu.memory_space<vmem>>, vector<8x32xf32>
    tpu.vector_store %arg24[%c0_30, %c0_31], %29 {strides = array<i32>} : memref<8x32xf32, #tpu.memory_space<vmem>>, vector<8x32xf32>,
    %c0_32 = arith.constant 0 : index
    %c0_33 = arith.constant 0 : index
    %31 = vector.load %arg9[%c0_32, %c0_33] : memref<32x32xf32, #tpu.memory_space<vmem>>, vector<32x32xf32>
    %c0_34 = arith.constant 0 : index
    %c0_35 = arith.constant 0 : index
    %32 = vector.load %arg10[%c0_34, %c0_35] : memref<32x32xf32, #tpu.memory_space<vmem>>, vector<32x32xf32>
    %c0_36 = arith.constant 0 : index
    %c0_37 = arith.constant 0 : index
    %33 = vector.load %arg11[%c0_36, %c0_37] : memref<32x32xf32, #tpu.memory_space<vmem>>, vector<32x32xf32>
    %c0_38 = arith.constant 0 : index
    %c0_39 = arith.constant 0 : index
    %34 = vector.load %arg16[%c0_38, %c0_39] : memref<1x32xf32, #tpu.memory_space<vmem>>, vector<1x32xf32>
    %c0_40 = arith.constant 0 : index
    %c0_41 = arith.constant 0 : index
    %35 = vector.load %arg21[%c0_40, %c0_41] : memref<2x32xf32, #tpu.memory_space<vmem>>, vector<2x32xf32>
    %c0_42 = arith.constant 0 : index
    %c0_43 = arith.constant 0 : index
    %36 = vector.load %arg22[%c0_42, %c0_43] : memref<8x32xf32, #tpu.memory_space<vmem>>, vector<2x32xf32>
    %c0_44 = arith.constant 0 : index
    %c0_45 = arith.constant 0 : index
    %37 = vector.load %arg23[%c0_44, %c0_45] : memref<8x32xf32, #tpu.memory_space<vmem>>, vector<2x32xf32>
    %c0_46 = arith.constant 0 : index
    %c0_47 = arith.constant 0 : index
    %38 = vector.load %arg24[%c0_46, %c0_47] : memref<8x32xf32, #tpu.memory_space<vmem>>, vector<2x32xf32>
    %cst_48 = arith.constant dense<0.000000e+00> : vector<2x32xf32>
    %39 = tpu.matmul %35, %31, %cst_48 {dimension_numbers = #tpu.dot_dimension_numbers<[1], [0], [0], [1], [0, 0, 1, 1], [], []>} : vector<2x32xf32>, vector<32x32xf32>, vector<2x32xf32> -> vector<2x32xf32>
    %cst_49 = arith.constant dense<0.000000e+00> : vector<2x32xf32>
    %40 = tpu.matmul %35, %32, %cst_49 {dimension_numbers = #tpu.dot_dimension_numbers<[1], [0], [0], [1], [0, 0, 1, 1], [], []>} : vector<2x32xf32>, vector<32x32xf32>, vector<2x32xf32> -> vector<2x32xf32>
    %cst_50 = arith.constant dense<0.000000e+00> : vector<2x32xf32>
    %41 = tpu.matmul %35, %33, %cst_50 {dimension_numbers = #tpu.dot_dimension_numbers<[1], [0], [0], [1], [0, 0, 1, 1], [], []>} : vector<2x32xf32>, vector<32x32xf32>, vector<2x32xf32> -> vector<2x32xf32>
    %42 = vector.broadcast %34 : vector<1x32xf32> to vector<2x32xf32>
    %43 = arith.addf %41, %42 : vector<2x32xf32>
    %44 = arith.addf %36, %39 : vector<2x32xf32>
    %45 = arith.negf %44 : vector<2x32xf32>
    %46 = math.exp %45 : vector<2x32xf32>
    %cst_51 = arith.constant 1.000000e+00 : f32
    %47 = vector.broadcast %cst_51 : f32 to vector<2x32xf32>
    %48 = arith.addf %47, %46 : vector<2x32xf32>
    %49 = arith.divf %47, %48 : vector<2x32xf32>
    %50 = arith.addf %37, %40 : vector<2x32xf32>
    %51 = arith.negf %50 : vector<2x32xf32>
    %52 = math.exp %51 : vector<2x32xf32>
    %cst_52 = arith.constant 1.000000e+00 : f32
    %53 = vector.broadcast %cst_52 : f32 to vector<2x32xf32>
    %54 = arith.addf %53, %52 : vector<2x32xf32>
    %55 = arith.divf %53, %54 : vector<2x32xf32>
    %56 = arith.mulf %49, %43 : vector<2x32xf32>
    %57 = arith.addf %38, %56 : vector<2x32xf32>
    %58 = math.tanh %57 : vector<2x32xf32>
    %cst_53 = arith.constant 1.000000e+00 : f32
    %59 = vector.broadcast %cst_53 : f32 to vector<2x32xf32>
    %60 = arith.subf %59, %55 : vector<2x32xf32>
    %61 = arith.mulf %60, %58 : vector<2x32xf32>
    %62 = arith.mulf %55, %35 : vector<2x32xf32>
    %63 = arith.addf %61, %62 : vector<2x32xf32>
    %c0_54 = arith.constant 0 : index
    %c0_55 = arith.constant 0 : index
    %64 = vector.load %arg25[%c0_54, %c0_55] : memref<8x32xf32, #tpu.memory_space<vmem>>, vector<2x32xf32>
    tpu.vector_store %arg25[%c0_54, %c0_55], %63 {strides = array<i32>} : memref<8x32xf32, #tpu.memory_space<vmem>>, vector<2x32xf32>,
    %c2 = arith.constant 2 : index
    %c0_56 = arith.constant 0 : index
    %65 = vector.load %arg22[%c2, %c0_56] : memref<8x32xf32, #tpu.memory_space<vmem>>, vector<2x32xf32>
    %c2_57 = arith.constant 2 : index
    %c0_58 = arith.constant 0 : index
    %66 = vector.load %arg23[%c2_57, %c0_58] : memref<8x32xf32, #tpu.memory_space<vmem>>, vector<2x32xf32>
    %c2_59 = arith.constant 2 : index
    %c0_60 = arith.constant 0 : index
    %67 = vector.load %arg24[%c2_59, %c0_60] : memref<8x32xf32, #tpu.memory_space<vmem>>, vector<2x32xf32>
    %cst_61 = arith.constant dense<0.000000e+00> : vector<2x32xf32>
    %68 = tpu.matmul %63, %31, %cst_61 {dimension_numbers = #tpu.dot_dimension_numbers<[1], [0], [0], [1], [0, 0, 1, 1], [], []>} : vector<2x32xf32>, vector<32x32xf32>, vector<2x32xf32> -> vector<2x32xf32>
    %cst_62 = arith.constant dense<0.000000e+00> : vector<2x32xf32>
    %69 = tpu.matmul %63, %32, %cst_62 {dimension_numbers = #tpu.dot_dimension_numbers<[1], [0], [0], [1], [0, 0, 1, 1], [], []>} : vector<2x32xf32>, vector<32x32xf32>, vector<2x32xf32> -> vector<2x32xf32>
    %cst_63 = arith.constant dense<0.000000e+00> : vector<2x32xf32>
    %70 = tpu.matmul %63, %33, %cst_63 {dimension_numbers = #tpu.dot_dimension_numbers<[1], [0], [0], [1], [0, 0, 1, 1], [], []>} : vector<2x32xf32>, vector<32x32xf32>, vector<2x32xf32> -> vector<2x32xf32>
    %71 = vector.broadcast %34 : vector<1x32xf32> to vector<2x32xf32>
    %72 = arith.addf %70, %71 : vector<2x32xf32>
    %73 = arith.addf %65, %68 : vector<2x32xf32>
    %74 = arith.negf %73 : vector<2x32xf32>
    %75 = math.exp %74 : vector<2x32xf32>
    %cst_64 = arith.constant 1.000000e+00 : f32
    %76 = vector.broadcast %cst_64 : f32 to vector<2x32xf32>
    %77 = arith.addf %76, %75 : vector<2x32xf32>
    %78 = arith.divf %76, %77 : vector<2x32xf32>
    %79 = arith.addf %66, %69 : vector<2x32xf32>
    %80 = arith.negf %79 : vector<2x32xf32>
    %81 = math.exp %80 : vector<2x32xf32>
    %cst_65 = arith.constant 1.000000e+00 : f32
    %82 = vector.broadcast %cst_65 : f32 to vector<2x32xf32>
    %83 = arith.addf %82, %81 : vector<2x32xf32>
    %84 = arith.divf %82, %83 : vector<2x32xf32>
    %85 = arith.mulf %78, %72 : vector<2x32xf32>
    %86 = arith.addf %67, %85 : vector<2x32xf32>
    %87 = math.tanh %86 : vector<2x32xf32>
    %cst_66 = arith.constant 1.000000e+00 : f32
    %88 = vector.broadcast %cst_66 : f32 to vector<2x32xf32>
    %89 = arith.subf %88, %84 : vector<2x32xf32>
    %90 = arith.mulf %89, %87 : vector<2x32xf32>
    %91 = arith.mulf %84, %63 : vector<2x32xf32>
    %92 = arith.addf %90, %91 : vector<2x32xf32>
    %c2_67 = arith.constant 2 : index
    %c0_68 = arith.constant 0 : index
    %93 = vector.load %arg25[%c2_67, %c0_68] : memref<8x32xf32, #tpu.memory_space<vmem>>, vector<2x32xf32>
    tpu.vector_store %arg25[%c2_67, %c0_68], %92 {strides = array<i32>} : memref<8x32xf32, #tpu.memory_space<vmem>>, vector<2x32xf32>,
    %c4 = arith.constant 4 : index
    %c0_69 = arith.constant 0 : index
    %94 = vector.load %arg22[%c4, %c0_69] : memref<8x32xf32, #tpu.memory_space<vmem>>, vector<2x32xf32>
    %c4_70 = arith.constant 4 : index
    %c0_71 = arith.constant 0 : index
    %95 = vector.load %arg23[%c4_70, %c0_71] : memref<8x32xf32, #tpu.memory_space<vmem>>, vector<2x32xf32>
    %c4_72 = arith.constant 4 : index
    %c0_73 = arith.constant 0 : index
    %96 = vector.load %arg24[%c4_72, %c0_73] : memref<8x32xf32, #tpu.memory_space<vmem>>, vector<2x32xf32>
    %cst_74 = arith.constant dense<0.000000e+00> : vector<2x32xf32>
    %97 = tpu.matmul %92, %31, %cst_74 {dimension_numbers = #tpu.dot_dimension_numbers<[1], [0], [0], [1], [0, 0, 1, 1], [], []>} : vector<2x32xf32>, vector<32x32xf32>, vector<2x32xf32> -> vector<2x32xf32>
    %cst_75 = arith.constant dense<0.000000e+00> : vector<2x32xf32>
    %98 = tpu.matmul %92, %32, %cst_75 {dimension_numbers = #tpu.dot_dimension_numbers<[1], [0], [0], [1], [0, 0, 1, 1], [], []>} : vector<2x32xf32>, vector<32x32xf32>, vector<2x32xf32> -> vector<2x32xf32>
    %cst_76 = arith.constant dense<0.000000e+00> : vector<2x32xf32>
    %99 = tpu.matmul %92, %33, %cst_76 {dimension_numbers = #tpu.dot_dimension_numbers<[1], [0], [0], [1], [0, 0, 1, 1], [], []>} : vector<2x32xf32>, vector<32x32xf32>, vector<2x32xf32> -> vector<2x32xf32>
    %100 = vector.broadcast %34 : vector<1x32xf32> to vector<2x32xf32>
    %101 = arith.addf %99, %100 : vector<2x32xf32>
    %102 = arith.addf %94, %97 : vector<2x32xf32>
    %103 = arith.negf %102 : vector<2x32xf32>
    %104 = math.exp %103 : vector<2x32xf32>
    %cst_77 = arith.constant 1.000000e+00 : f32
    %105 = vector.broadcast %cst_77 : f32 to vector<2x32xf32>
    %106 = arith.addf %105, %104 : vector<2x32xf32>
    %107 = arith.divf %105, %106 : vector<2x32xf32>
    %108 = arith.addf %95, %98 : vector<2x32xf32>
    %109 = arith.negf %108 : vector<2x32xf32>
    %110 = math.exp %109 : vector<2x32xf32>
    %cst_78 = arith.constant 1.000000e+00 : f32
    %111 = vector.broadcast %cst_78 : f32 to vector<2x32xf32>
    %112 = arith.addf %111, %110 : vector<2x32xf32>
    %113 = arith.divf %111, %112 : vector<2x32xf32>
    %114 = arith.mulf %107, %101 : vector<2x32xf32>
    %115 = arith.addf %96, %114 : vector<2x32xf32>
    %116 = math.tanh %115 : vector<2x32xf32>
    %cst_79 = arith.constant 1.000000e+00 : f32
    %117 = vector.broadcast %cst_79 : f32 to vector<2x32xf32>
    %118 = arith.subf %117, %113 : vector<2x32xf32>
    %119 = arith.mulf %118, %116 : vector<2x32xf32>
    %120 = arith.mulf %113, %92 : vector<2x32xf32>
    %121 = arith.addf %119, %120 : vector<2x32xf32>
    %c4_80 = arith.constant 4 : index
    %c0_81 = arith.constant 0 : index
    %122 = vector.load %arg25[%c4_80, %c0_81] : memref<8x32xf32, #tpu.memory_space<vmem>>, vector<2x32xf32>
    tpu.vector_store %arg25[%c4_80, %c0_81], %121 {strides = array<i32>} : memref<8x32xf32, #tpu.memory_space<vmem>>, vector<2x32xf32>,
    %c6 = arith.constant 6 : index
    %c0_82 = arith.constant 0 : index
    %123 = vector.load %arg22[%c6, %c0_82] : memref<8x32xf32, #tpu.memory_space<vmem>>, vector<2x32xf32>
    %c6_83 = arith.constant 6 : index
    %c0_84 = arith.constant 0 : index
    %124 = vector.load %arg23[%c6_83, %c0_84] : memref<8x32xf32, #tpu.memory_space<vmem>>, vector<2x32xf32>
    %c6_85 = arith.constant 6 : index
    %c0_86 = arith.constant 0 : index
    %125 = vector.load %arg24[%c6_85, %c0_86] : memref<8x32xf32, #tpu.memory_space<vmem>>, vector<2x32xf32>
    %cst_87 = arith.constant dense<0.000000e+00> : vector<2x32xf32>
    %126 = tpu.matmul %121, %31, %cst_87 {dimension_numbers = #tpu.dot_dimension_numbers<[1], [0], [0], [1], [0, 0, 1, 1], [], []>} : vector<2x32xf32>, vector<32x32xf32>, vector<2x32xf32> -> vector<2x32xf32>
    %cst_88 = arith.constant dense<0.000000e+00> : vector<2x32xf32>
    %127 = tpu.matmul %121, %32, %cst_88 {dimension_numbers = #tpu.dot_dimension_numbers<[1], [0], [0], [1], [0, 0, 1, 1], [], []>} : vector<2x32xf32>, vector<32x32xf32>, vector<2x32xf32> -> vector<2x32xf32>
    %cst_89 = arith.constant dense<0.000000e+00> : vector<2x32xf32>
    %128 = tpu.matmul %121, %33, %cst_89 {dimension_numbers = #tpu.dot_dimension_numbers<[1], [0], [0], [1], [0, 0, 1, 1], [], []>} : vector<2x32xf32>, vector<32x32xf32>, vector<2x32xf32> -> vector<2x32xf32>
    %129 = vector.broadcast %34 : vector<1x32xf32> to vector<2x32xf32>
    %130 = arith.addf %128, %129 : vector<2x32xf32>
    %131 = arith.addf %123, %126 : vector<2x32xf32>
    %132 = arith.negf %131 : vector<2x32xf32>
    %133 = math.exp %132 : vector<2x32xf32>
    %cst_90 = arith.constant 1.000000e+00 : f32
    %134 = vector.broadcast %cst_90 : f32 to vector<2x32xf32>
    %135 = arith.addf %134, %133 : vector<2x32xf32>
    %136 = arith.divf %134, %135 : vector<2x32xf32>
    %137 = arith.addf %124, %127 : vector<2x32xf32>
    %138 = arith.negf %137 : vector<2x32xf32>
    %139 = math.exp %138 : vector<2x32xf32>
    %cst_91 = arith.constant 1.000000e+00 : f32
    %140 = vector.broadcast %cst_91 : f32 to vector<2x32xf32>
    %141 = arith.addf %140, %139 : vector<2x32xf32>
    %142 = arith.divf %140, %141 : vector<2x32xf32>
    %143 = arith.mulf %136, %130 : vector<2x32xf32>
    %144 = arith.addf %125, %143 : vector<2x32xf32>
    %145 = math.tanh %144 : vector<2x32xf32>
    %cst_92 = arith.constant 1.000000e+00 : f32
    %146 = vector.broadcast %cst_92 : f32 to vector<2x32xf32>
    %147 = arith.subf %146, %142 : vector<2x32xf32>
    %148 = arith.mulf %147, %145 : vector<2x32xf32>
    %149 = arith.mulf %142, %121 : vector<2x32xf32>
    %150 = arith.addf %148, %149 : vector<2x32xf32>
    %c6_93 = arith.constant 6 : index
    %c0_94 = arith.constant 0 : index
    %151 = vector.load %arg25[%c6_93, %c0_94] : memref<8x32xf32, #tpu.memory_space<vmem>>, vector<2x32xf32>
    tpu.vector_store %arg25[%c6_93, %c0_94], %150 {strides = array<i32>} : memref<8x32xf32, #tpu.memory_space<vmem>>, vector<2x32xf32>,
    %c0_95 = arith.constant 0 : index
    %c0_96 = arith.constant 0 : index
    %152 = vector.load %arg21[%c0_95, %c0_96] : memref<2x32xf32, #tpu.memory_space<vmem>>, vector<2x32xf32>
    tpu.vector_store %arg21[%c0_95, %c0_96], %150 {strides = array<i32>} : memref<2x32xf32, #tpu.memory_space<vmem>>, vector<2x32xf32>,
    %c0_97 = arith.constant 0 : index
    %c0_98 = arith.constant 0 : index
    %153 = vector.load %arg20[%c0_97, %c0_98] : memref<2x32xf32, #tpu.memory_space<vmem>>, vector<2x32xf32>
    tpu.vector_store %arg20[%c0_97, %c0_98], %150 {strides = array<i32>} : memref<2x32xf32, #tpu.memory_space<vmem>>, vector<2x32xf32>,
    %c0_99 = arith.constant 0 : index
    %c0_100 = arith.constant 0 : index
    %154 = vector.load %arg25[%c0_99, %c0_100] : memref<8x32xf32, #tpu.memory_space<vmem>>, vector<8x32xf32>
    %cst_101 = arith.constant dense<0.000000e+00> : vector<8xf32>
    %155 = vector.multi_reduction <add>, %154, %cst_101 [1] : vector<8x32xf32> to vector<8xf32>
    %156 = vector.shape_cast %155 : vector<8xf32> to vector<8x1xf32>
    %cst_102 = arith.constant 3.200000e+01 : f32
    %157 = vector.broadcast %cst_102 : f32 to vector<8x1xf32>
    %158 = arith.divf %156, %157 : vector<8x1xf32>
    %159 = vector.broadcast %158 : vector<8x1xf32> to vector<8x32xf32>
    %160 = arith.subf %154, %159 : vector<8x32xf32>
    %161 = arith.mulf %160, %160 : vector<8x32xf32>
    %cst_103 = arith.constant dense<0.000000e+00> : vector<8xf32>
    %162 = vector.multi_reduction <add>, %161, %cst_103 [1] : vector<8x32xf32> to vector<8xf32>
    %163 = vector.shape_cast %162 : vector<8xf32> to vector<8x1xf32>
    %cst_104 = arith.constant 3.200000e+01 : f32
    %164 = vector.broadcast %cst_104 : f32 to vector<8x1xf32>
    %165 = arith.divf %163, %164 : vector<8x1xf32>
    %166 = vector.broadcast %158 : vector<8x1xf32> to vector<8x32xf32>
    %167 = arith.subf %154, %166 : vector<8x32xf32>
    %cst_105 = arith.constant 9.99999974E-6 : f32
    %168 = vector.broadcast %cst_105 : f32 to vector<8x1xf32>
    %169 = arith.addf %165, %168 : vector<8x1xf32>
    %170 = math.rsqrt %169 : vector<8x1xf32>
    %171 = vector.broadcast %170 : vector<8x1xf32> to vector<8x32xf32>
    %172 = arith.mulf %167, %171 : vector<8x32xf32>
    %c0_106 = arith.constant 0 : index
    %c0_107 = arith.constant 0 : index
    %173 = vector.load %arg17[%c0_106, %c0_107] : memref<1x32xf32, #tpu.memory_space<vmem>>, vector<1x32xf32>
    %174 = vector.broadcast %173 : vector<1x32xf32> to vector<8x32xf32>
    %175 = arith.mulf %172, %174 : vector<8x32xf32>
    %c0_108 = arith.constant 0 : index
    %c0_109 = arith.constant 0 : index
    %176 = vector.load %arg18[%c0_108, %c0_109] : memref<1x32xf32, #tpu.memory_space<vmem>>, vector<1x32xf32>
    %177 = vector.broadcast %176 : vector<1x32xf32> to vector<8x32xf32>
    %178 = arith.addf %175, %177 : vector<8x32xf32>
    %c0_110 = arith.constant 0 : index
    %c0_111 = arith.constant 0 : index
    %179 = vector.load %arg1[%c0_110, %c0_111] : memref<8x32xf32, #tpu.memory_space<vmem>>, vector<8x32xf32>
    %180 = arith.addf %178, %179 : vector<8x32xf32>
    %c0_112 = arith.constant 0 : index
    %c0_113 = arith.constant 0 : index
    %181 = vector.load %arg19[%c0_112, %c0_113] : memref<8x32xf32, #tpu.memory_space<vmem>>, vector<8x32xf32>
    tpu.vector_store %arg19[%c0_112, %c0_113], %180 {strides = array<i32>} : memref<8x32xf32, #tpu.memory_space<vmem>>, vector<8x32xf32>,
    return
  }
  func.func @transform_0(%arg0: i32) -> (i32, i32) {
    %c0_i32 = arith.constant 0 : i32
    %c0_i32_0 = arith.constant 0 : i32
    return %arg0, %c0_i32 : i32, i32
  }
  func.func @transform_1(%arg0: i32) -> (i32, i32) {
    %c0_i32 = arith.constant 0 : i32
    %c0_i32_0 = arith.constant 0 : i32
    return %arg0, %c0_i32 : i32, i32
  }
  func.func @transform_2(%arg0: i32) -> (i32, i32) {
    %c0_i32 = arith.constant 0 : i32
    %c0_i32_0 = arith.constant 0 : i32
    %c0_i32_1 = arith.constant 0 : i32
    return %c0_i32, %c0_i32_0 : i32, i32
  }
  func.func @transform_3(%arg0: i32) -> (i32, i32) {
    %c0_i32 = arith.constant 0 : i32
    %c0_i32_0 = arith.constant 0 : i32
    %c0_i32_1 = arith.constant 0 : i32
    return %c0_i32, %c0_i32_0 : i32, i32
  }
  func.func @transform_4(%arg0: i32) -> (i32, i32) {
    %c0_i32 = arith.constant 0 : i32
    %c0_i32_0 = arith.constant 0 : i32
    %c0_i32_1 = arith.constant 0 : i32
    return %c0_i32, %c0_i32_0 : i32, i32
  }
  func.func @transform_5(%arg0: i32) -> (i32, i32) {
    %c0_i32 = arith.constant 0 : i32
    %c0_i32_0 = arith.constant 0 : i32
    %c0_i32_1 = arith.constant 0 : i32
    return %c0_i32, %c0_i32_0 : i32, i32
  }
  func.func @transform_6(%arg0: i32) -> (i32, i32) {
    %c0_i32 = arith.constant 0 : i32
    %c0_i32_0 = arith.constant 0 : i32
    %c0_i32_1 = arith.constant 0 : i32
    return %c0_i32, %c0_i32_0 : i32, i32
  }
  func.func @transform_7(%arg0: i32) -> (i32, i32) {
    %c0_i32 = arith.constant 0 : i32
    %c0_i32_0 = arith.constant 0 : i32
    %c0_i32_1 = arith.constant 0 : i32
    return %c0_i32, %c0_i32_0 : i32, i32
  }
  func.func @transform_8(%arg0: i32) -> (i32, i32) {
    %c0_i32 = arith.constant 0 : i32
    %c0_i32_0 = arith.constant 0 : i32
    %c0_i32_1 = arith.constant 0 : i32
    return %c0_i32, %c0_i32_0 : i32, i32
  }
  func.func @transform_9(%arg0: i32) -> (i32, i32) {
    %c0_i32 = arith.constant 0 : i32
    %c0_i32_0 = arith.constant 0 : i32
    %c0_i32_1 = arith.constant 0 : i32
    return %c0_i32, %c0_i32_0 : i32, i32
  }
  func.func @transform_10(%arg0: i32) -> (i32, i32) {
    %c0_i32 = arith.constant 0 : i32
    %c0_i32_0 = arith.constant 0 : i32
    %c0_i32_1 = arith.constant 0 : i32
    return %c0_i32, %c0_i32_0 : i32, i32
  }
  func.func @transform_11(%arg0: i32) -> (i32, i32) {
    %c0_i32 = arith.constant 0 : i32
    %c0_i32_0 = arith.constant 0 : i32
    %c0_i32_1 = arith.constant 0 : i32
    return %c0_i32, %c0_i32_0 : i32, i32
  }
  func.func @transform_12(%arg0: i32) -> (i32, i32) {
    %c0_i32 = arith.constant 0 : i32
    %c0_i32_0 = arith.constant 0 : i32
    %c0_i32_1 = arith.constant 0 : i32
    return %c0_i32, %c0_i32_0 : i32, i32
  }
  func.func @transform_13(%arg0: i32) -> (i32, i32) {
    %c0_i32 = arith.constant 0 : i32
    %c0_i32_0 = arith.constant 0 : i32
    %c0_i32_1 = arith.constant 0 : i32
    return %c0_i32, %c0_i32_0 : i32, i32
  }
  func.func @transform_14(%arg0: i32) -> (i32, i32) {
    %c0_i32 = arith.constant 0 : i32
    %c0_i32_0 = arith.constant 0 : i32
    %c0_i32_1 = arith.constant 0 : i32
    return %c0_i32, %c0_i32_0 : i32, i32
  }
  func.func @transform_15(%arg0: i32) -> (i32, i32) {
    %c0_i32 = arith.constant 0 : i32
    %c0_i32_0 = arith.constant 0 : i32
    %c0_i32_1 = arith.constant 0 : i32
    return %c0_i32, %c0_i32_0 : i32, i32
  }
  func.func @transform_16(%arg0: i32) -> (i32, i32) {
    %c0_i32 = arith.constant 0 : i32
    %c0_i32_0 = arith.constant 0 : i32
    %c0_i32_1 = arith.constant 0 : i32
    return %c0_i32, %c0_i32_0 : i32, i32
  }
  func.func @transform_17(%arg0: i32) -> (i32, i32) {
    %c0_i32 = arith.constant 0 : i32
    %c0_i32_0 = arith.constant 0 : i32
    %c0_i32_1 = arith.constant 0 : i32
    return %c0_i32, %c0_i32_0 : i32, i32
  }
  func.func @transform_18(%arg0: i32) -> (i32, i32) {
    %c0_i32 = arith.constant 0 : i32
    %c0_i32_0 = arith.constant 0 : i32
    return %arg0, %c0_i32 : i32, i32
  }
  func.func @transform_19(%arg0: i32) -> (i32, i32) {
    %c0_i32 = arith.constant 0 : i32
    %c0_i32_0 = arith.constant 0 : i32
    %c0_i32_1 = arith.constant 0 : i32
    return %c0_i32, %c0_i32_0 : i32, i32
  }
}

</mosaic_0001>

<llo_original>
// kernel: rnmt_plus_decoder_layer.1
$region0: #{rnmt_plus_decoder_layer.1}
  #allocation0 [shape = 'u32[]', space=smem, size = 0x4, offset = 0x4, fixed_abs, tag = 'smem constant byte address 0x4 - core index']
  #allocation1 [shape = 'u32[144,128]{1,0:T(1,128)}', space=vmem, size = 0x12000, scoped, tag = 'internal scratch']
  #allocation2 [shape = 'f32[2,32]{1,0:T(2,128)}', space=vmem, size = 0x400, scoped, tag = 'scratch operand']
  #allocation3 [shape = 'f32[8,32]{1,0:T(8,128)}', space=vmem, size = 0x1000, scoped, tag = 'scratch operand']
  #allocation4 [shape = 'f32[8,32]{1,0:T(8,128)}', space=vmem, size = 0x1000, scoped, tag = 'scratch operand']
  #allocation5 [shape = 'f32[8,32]{1,0:T(8,128)}', space=vmem, size = 0x1000, scoped, tag = 'scratch operand']
  #allocation6 [shape = 'f32[8,32]{1,0:T(8,128)}', space=vmem, size = 0x1000, scoped, tag = 'scratch operand']
  %s0 = inlined_call_operand.vmem [shape: f32[16,32], index: 0, kind: input, shape index: {}]
  %s1 = inlined_call_operand.vmem [shape: f32[16,32], index: 1, kind: input, shape index: {}]
  %s2 = inlined_call_operand.vmem [shape: f32[2,32], index: 2, kind: input, shape index: {}]
  %s3 = inlined_call_operand.vmem [shape: f32[32,32], index: 3, kind: input, shape index: {}]
  %s4 = inlined_call_operand.vmem [shape: f32[32,32], index: 4, kind: input, shape index: {}]
  %s5 = inlined_call_operand.hbm [shape: f32[32,32], index: 5, kind: input, shape index: {}]
  %s6 = inlined_call_operand.hbm [shape: f32[32,32], index: 6, kind: input, shape index: {}]
  %s7 = inlined_call_operand.hbm [shape: f32[32,32], index: 7, kind: input, shape index: {}]
  %s8 = inlined_call_operand.vmem [shape: f32[32,32], index: 8, kind: input, shape index: {}]
  %s9 = inlined_call_operand.hbm [shape: f32[32,32], index: 9, kind: input, shape index: {}]
  %s10 = inlined_call_operand.hbm [shape: f32[32,32], index: 10, kind: input, shape index: {}]
  %s11 = inlined_call_operand.vmem [shape: f32[1,32], index: 11, kind: input, shape index: {}]
  %s12 = inlined_call_operand.hbm [shape: f32[1,32], index: 12, kind: input, shape index: {}]
  %s13 = inlined_call_operand.hbm [shape: f32[1,32], index: 13, kind: input, shape index: {}]
  %s14 = inlined_call_operand.hbm [shape: f32[1,32], index: 14, kind: input, shape index: {}]
  %s15 = inlined_call_operand.vmem [shape: f32[1,32], index: 15, kind: input, shape index: {}]
  %s16 = inlined_call_operand.hbm [shape: f32[1,32], index: 16, kind: input, shape index: {}]
  %s17 = inlined_call_operand.hbm [shape: f32[1,32], index: 17, kind: input, shape index: {}]
  %s18 = inlined_call_operand.vmem [shape: f32[16,32], index: 18, kind: output, shape index: {0}]
  %s19 = inlined_call_operand.hbm [shape: f32[2,32], index: 19, kind: output, shape index: {1}]
  %20 = xla_tuple %s18, %s19
  %s21 = sld [smem:[#allocation0]]
  $region157: #{rnmt_plus_decoder_layer.1} parent=0
    _
  %s23 = ssub.s32 1, %s21
  %s24 = scalar_select 0, %s23, %s21
  $region1: #{rnmt_plus_decoder_layer.1} parent=0
    #allocation7 [shape = 'u8[16384]{0}', space=vmem, size = 0x4000, scoped, tag = 'input window, operand 5, single buffered']
    #allocation8 [shape = 's32[2]{0}', space=sflag, size = 0x8, scoped, tag = 'scoped memory for rnmt_plus_decoder_layer.1']
    #allocation9 [shape = 's32[2]{0}', space=sflag, size = 0x8, scoped, tag = 'scoped memory for rnmt_plus_decoder_layer.1']
    #allocation10 [shape = 'u8[16384]{0}', space=vmem, size = 0x4000, scoped, tag = 'input window, operand 6, single buffered']
    #allocation11 [shape = 's32[1]{0}', space=sflag, size = 0x4, scoped, tag = 'scoped memory for rnmt_plus_decoder_layer.1']
    #allocation12 [shape = 'u8[16384]{0}', space=vmem, size = 0x4000, scoped, tag = 'input window, operand 7, single buffered']
    #allocation13 [shape = 'u8[16384]{0}', space=vmem, size = 0x4000, scoped, tag = 'input window, operand 9, single buffered']
    #allocation14 [shape = 's32[1]{0}', space=sflag, size = 0x4, scoped, tag = 'scoped memory for rnmt_plus_decoder_layer.1']
    #allocation15 [shape = 'u8[16384]{0}', space=vmem, size = 0x4000, scoped, tag = 'input window, operand 10, single buffered']
    #allocation16 [shape = 'u8[512]{0}', space=vmem, size = 0x400, scoped, tag = 'input window, operand 12, single buffered']
    #allocation17 [shape = 's32[1]{0}', space=sflag, size = 0x4, scoped, tag = 'scoped memory for rnmt_plus_decoder_layer.1']
    #allocation18 [shape = 'u8[512]{0}', space=vmem, size = 0x400, scoped, tag = 'input window, operand 13, single buffered']
    #allocation19 [shape = 'u8[512]{0}', space=vmem, size = 0x400, scoped, tag = 'input window, operand 14, single buffered']
    #allocation20 [shape = 's32[1]{0}', space=sflag, size = 0x4, scoped, tag = 'scoped memory for rnmt_plus_decoder_layer.1']
    #allocation21 [shape = 'u8[512]{0}', space=vmem, size = 0x400, scoped, tag = 'input window, operand 16, single buffered']
    #allocation22 [shape = 'u8[512]{0}', space=vmem, size = 0x400, scoped, tag = 'input window, operand 17, single buffered']
    #allocation23 [shape = 's32[1]{0}', space=sflag, size = 0x4, scoped, tag = 'scoped memory for rnmt_plus_decoder_layer.1']
    #allocation24 [shape = 'u8[1024]{0}', space=vmem, size = 0x400, scoped, tag = 'output window, operand 1, single buffered']
    %25 = vsyncpa [#allocation8], 0
    %26 = vsyncpa [#allocation11], 0
    %27 = vsyncpa [#allocation14], 0
    %28 = vsyncpa [#allocation17], 0
    %29 = vsyncpa [#allocation20], 0
    %30 = vsyncpa [#allocation23], 0
    %31 = vsyncpa [#allocation9], 0
    loop: start=0, step=1, limit=4
    $region2: #{rnmt_plus_decoder_layer.1} parent=1 // loop_pre_header
      _
    $region3: #{rnmt_plus_decoder_layer.1} parent=1 // loop_header
      %s33 = sphi 0, %s37
      %p34 = scmp.ge.s32.totalorder %s33, 4
      %s43 = sphi 0, %s45
      %s46 = sphi 0, %s43
      %s47 = sphi 0, %s46
      %s63 = sphi 0, %s47
      %s69 = sphi 0, %s71
      %s72 = sphi 0, %s69
      %s73 = sphi 0, %s72
      %s89 = sphi 0, %s73
      %s93 = sphi 0, %s93
      %s95 = sphi 0, %s93
      %s96 = sphi 0, %s95
      %s110 = sphi 0, %s96
      %s114 = sphi 0, %s114
      %s116 = sphi 0, %s114
      %s117 = sphi 0, %s116
      %s131 = sphi 0, %s117
      %s135 = sphi 0, %s135
      %s137 = sphi 0, %s135
      %s138 = sphi 0, %s137
      %s152 = sphi 0, %s138
      %s156 = sphi 0, %s156
      %s158 = sphi 0, %s156
      %s159 = sphi 0, %s158
      %s173 = sphi 0, %s159
      %s177 = sphi 0, %s177
      %s179 = sphi 0, %s177
      %s180 = sphi 0, %s179
      %s194 = sphi 0, %s180
      %s198 = sphi 0, %s198
      %s200 = sphi 0, %s198
      %s201 = sphi 0, %s200
      %s215 = sphi 0, %s201
      %s219 = sphi 0, %s219
      %s221 = sphi 0, %s219
      %s222 = sphi 0, %s221
      %s236 = sphi 0, %s222
      %s240 = sphi 0, %s240
      %s242 = sphi 0, %s240
      %s243 = sphi 0, %s242
      %s257 = sphi 0, %s243
      %s261 = sphi 0, %s261
      %s263 = sphi 0, %s261
      %s264 = sphi 0, %s263
      %s278 = sphi 0, %s264
      %s282 = sphi 0, %s282
      %s284 = sphi 0, %s282
      %s285 = sphi 0, %s284
      %s299 = sphi 0, %s285
      %s303 = sphi 0, %s303
      %s305 = sphi 0, %s303
      %s306 = sphi 0, %s305
      %s320 = sphi 0, %s306
      %s324 = sphi 0, %s324
      %s326 = sphi 0, %s324
      %s327 = sphi 0, %s326
      %s341 = sphi 0, %s327
      %s345 = sphi 0, %s345
      %s347 = sphi 0, %s345
      %s348 = sphi 0, %s347
      %s362 = sphi 0, %s348
      %s366 = sphi 0, %s366
      %s368 = sphi 0, %s366
      %s369 = sphi 0, %s368
      %s383 = sphi 0, %s369
      %s387 = sphi 0, %s387
      %s389 = sphi 0, %s387
      %s390 = sphi 0, %s389
      %s404 = sphi 0, %s390
      %s408 = sphi 0, %s408
      %s410 = sphi 0, %s408
      %s411 = sphi 0, %s410
      %s425 = sphi 0, %s411
      %s431 = sphi 0, %s433
      %s434 = sphi 0, %s431
      %s435 = sphi 0, %s434
      %s451 = sphi 0, %s435
      %s455 = sphi 0, %s455
      %s457 = sphi 0, %s455
      %s458 = sphi 0, %s457
      %s472 = sphi 0, %s458
    $region4: #{rnmt_plus_decoder_layer.1} parent=1 // loop_header_branch
      %36 = sbr.rel (%p34) target = $region8
    $region5: #{rnmt_plus_decoder_layer.1} parent=1 // loop_body
      %s38 = ssub.s32 %s33, 1
      %s39 = ssub.s32 %s33, 2
      %s40 = sadd.s32 %s33, 1
      %s41 = ssub.s32 %s33, %s40
      %p42 = scmp.eq.s32.totalorder %s41, 0
      %s44 = sadd.s32 %s43, 1
      %s45 = scalar_select %p42, %s43, %s44
      %p48 = pneg %p42
      %p49 = scmp.eq.s32.totalorder %s33, 1
      %p50 = por %p48, %p49
      %p51 = scmp.ne.s32.totalorder %s43, %s46
      %p52 = scmp.eq.s32.totalorder %s33, 0
      %p53 = por %p51, %p52
      %p54 = scmp.ne.s32.totalorder %s43, %s46
      %p55 = scmp.eq.s32.totalorder %s38, 1
      %p56 = por %p54, %p55
      %p57 = scmp.ne.s32.totalorder %s46, %s47
      %p58 = scmp.eq.s32.totalorder %s38, 0
      %p59 = por %p57, %p58
      %p60 = scmp.ne.s32.totalorder %s46, %s47
      %p61 = scmp.eq.s32.totalorder %s39, 1
      %p62 = por %p60, %p61
      %p64 = scmp.ne.s32.totalorder %s47, %s63
      %p65 = scmp.eq.s32.totalorder %s39, 0
      %p66 = por %p64, %p65
      %s67 = ssub.s32 %s33, %s40
      %p68 = scmp.eq.s32.totalorder %s67, 0
      %s70 = sadd.s32 %s69, 1
      %s71 = scalar_select %p68, %s69, %s70
      %p74 = pneg %p68
      %p75 = scmp.eq.s32.totalorder %s33, 1
      %p76 = por %p74, %p75
      %p77 = scmp.ne.s32.totalorder %s69, %s72
      %p78 = scmp.eq.s32.totalorder %s33, 0
      %p79 = por %p77, %p78
      %p80 = scmp.ne.s32.totalorder %s69, %s72
      %p81 = scmp.eq.s32.totalorder %s38, 1
      %p82 = por %p80, %p81
      %p83 = scmp.ne.s32.totalorder %s72, %s73
      %p84 = scmp.eq.s32.totalorder %s38, 0
      %p85 = por %p83, %p84
      %p86 = scmp.ne.s32.totalorder %s72, %s73
      %p87 = scmp.eq.s32.totalorder %s39, 1
      %p88 = por %p86, %p87
      %p90 = scmp.ne.s32.totalorder %s73, %s89
      %p91 = scmp.eq.s32.totalorder %s39, 0
      %p92 = por %p90, %p91
      %s94 = sadd.s32 %s93, 1
      %p97 = scmp.eq.s32.totalorder %s33, 1
      %p98 = scmp.ne.s32.totalorder %s93, %s95
      %p99 = scmp.eq.s32.totalorder %s33, 0
      %p100 = por %p98, %p99
      %p101 = scmp.ne.s32.totalorder %s93, %s95
      %p102 = scmp.eq.s32.totalorder %s38, 1
      %p103 = por %p101, %p102
      %p104 = scmp.ne.s32.totalorder %s95, %s96
      %p105 = scmp.eq.s32.totalorder %s38, 0
      %p106 = por %p104, %p105
      %p107 = scmp.ne.s32.totalorder %s95, %s96
      %p108 = scmp.eq.s32.totalorder %s39, 1
      %p109 = por %p107, %p108
      %p111 = scmp.ne.s32.totalorder %s96, %s110
      %p112 = scmp.eq.s32.totalorder %s39, 0
      %p113 = por %p111, %p112
      %s115 = sadd.s32 %s114, 1
      %p118 = scmp.eq.s32.totalorder %s33, 1
      %p119 = scmp.ne.s32.totalorder %s114, %s116
      %p120 = scmp.eq.s32.totalorder %s33, 0
      %p121 = por %p119, %p120
      %p122 = scmp.ne.s32.totalorder %s114, %s116
      %p123 = scmp.eq.s32.totalorder %s38, 1
      %p124 = por %p122, %p123
      %p125 = scmp.ne.s32.totalorder %s116, %s117
      %p126 = scmp.eq.s32.totalorder %s38, 0
      %p127 = por %p125, %p126
      %p128 = scmp.ne.s32.totalorder %s116, %s117
      %p129 = scmp.eq.s32.totalorder %s39, 1
      %p130 = por %p128, %p129
      %p132 = scmp.ne.s32.totalorder %s117, %s131
      %p133 = scmp.eq.s32.totalorder %s39, 0
      %p134 = por %p132, %p133
      %s136 = sadd.s32 %s135, 1
      %p139 = scmp.eq.s32.totalorder %s33, 1
      %p140 = scmp.ne.s32.totalorder %s135, %s137
      %p141 = scmp.eq.s32.totalorder %s33, 0
      %p142 = por %p140, %p141
      %p143 = scmp.ne.s32.totalorder %s135, %s137
      %p144 = scmp.eq.s32.totalorder %s38, 1
      %p145 = por %p143, %p144
      %p146 = scmp.ne.s32.totalorder %s137, %s138
      %p147 = scmp.eq.s32.totalorder %s38, 0
      %p148 = por %p146, %p147
      %p149 = scmp.ne.s32.totalorder %s137, %s138
      %p150 = scmp.eq.s32.totalorder %s39, 1
      %p151 = por %p149, %p150
      %p153 = scmp.ne.s32.totalorder %s138, %s152
      %p154 = scmp.eq.s32.totalorder %s39, 0
      %p155 = por %p153, %p154
      %s157 = sadd.s32 %s156, 1
      %p160 = scmp.eq.s32.totalorder %s33, 1
      %p161 = scmp.ne.s32.totalorder %s156, %s158
      %p162 = scmp.eq.s32.totalorder %s33, 0
      %p163 = por %p161, %p162
      %p164 = scmp.ne.s32.totalorder %s156, %s158
      %p165 = scmp.eq.s32.totalorder %s38, 1
      %p166 = por %p164, %p165
      %p167 = scmp.ne.s32.totalorder %s158, %s159
      %p168 = scmp.eq.s32.totalorder %s38, 0
      %p169 = por %p167, %p168
      %p170 = scmp.ne.s32.totalorder %s158, %s159
      %p171 = scmp.eq.s32.totalorder %s39, 1
      %p172 = por %p170, %p171
      %p174 = scmp.ne.s32.totalorder %s159, %s173
      %p175 = scmp.eq.s32.totalorder %s39, 0
      %p176 = por %p174, %p175
      %s178 = sadd.s32 %s177, 1
      %p181 = scmp.eq.s32.totalorder %s33, 1
      %p182 = scmp.ne.s32.totalorder %s177, %s179
      %p183 = scmp.eq.s32.totalorder %s33, 0
      %p184 = por %p182, %p183
      %p185 = scmp.ne.s32.totalorder %s177, %s179
      %p186 = scmp.eq.s32.totalorder %s38, 1
      %p187 = por %p185, %p186
      %p188 = scmp.ne.s32.totalorder %s179, %s180
      %p189 = scmp.eq.s32.totalorder %s38, 0
      %p190 = por %p188, %p189
      %p191 = scmp.ne.s32.totalorder %s179, %s180
      %p192 = scmp.eq.s32.totalorder %s39, 1
      %p193 = por %p191, %p192
      %p195 = scmp.ne.s32.totalorder %s180, %s194
      %p196 = scmp.eq.s32.totalorder %s39, 0
      %p197 = por %p195, %p196
      %s199 = sadd.s32 %s198, 1
      %p202 = scmp.eq.s32.totalorder %s33, 1
      %p203 = scmp.ne.s32.totalorder %s198, %s200
      %p204 = scmp.eq.s32.totalorder %s33, 0
      %p205 = por %p203, %p204
      %p206 = scmp.ne.s32.totalorder %s198, %s200
      %p207 = scmp.eq.s32.totalorder %s38, 1
      %p208 = por %p206, %p207
      %p209 = scmp.ne.s32.totalorder %s200, %s201
      %p210 = scmp.eq.s32.totalorder %s38, 0
      %p211 = por %p209, %p210
      %p212 = scmp.ne.s32.totalorder %s200, %s201
      %p213 = scmp.eq.s32.totalorder %s39, 1
      %p214 = por %p212, %p213
      %p216 = scmp.ne.s32.totalorder %s201, %s215
      %p217 = scmp.eq.s32.totalorder %s39, 0
      %p218 = por %p216, %p217
      %s220 = sadd.s32 %s219, 1
      %p223 = scmp.eq.s32.totalorder %s33, 1
      %p224 = scmp.ne.s32.totalorder %s219, %s221
      %p225 = scmp.eq.s32.totalorder %s33, 0
      %p226 = por %p224, %p225
      %p227 = scmp.ne.s32.totalorder %s219, %s221
      %p228 = scmp.eq.s32.totalorder %s38, 1
      %p229 = por %p227, %p228
      %p230 = scmp.ne.s32.totalorder %s221, %s222
      %p231 = scmp.eq.s32.totalorder %s38, 0
      %p232 = por %p230, %p231
      %p233 = scmp.ne.s32.totalorder %s221, %s222
      %p234 = scmp.eq.s32.totalorder %s39, 1
      %p235 = por %p233, %p234
      %p237 = scmp.ne.s32.totalorder %s222, %s236
      %p238 = scmp.eq.s32.totalorder %s39, 0
      %p239 = por %p237, %p238
      %s241 = sadd.s32 %s240, 1
      %p244 = scmp.eq.s32.totalorder %s33, 1
      %p245 = scmp.ne.s32.totalorder %s240, %s242
      %p246 = scmp.eq.s32.totalorder %s33, 0
      %p247 = por %p245, %p246
      %p248 = scmp.ne.s32.totalorder %s240, %s242
      %p249 = scmp.eq.s32.totalorder %s38, 1
      %p250 = por %p248, %p249
      %p251 = scmp.ne.s32.totalorder %s242, %s243
      %p252 = scmp.eq.s32.totalorder %s38, 0
      %p253 = por %p251, %p252
      %p254 = scmp.ne.s32.totalorder %s242, %s243
      %p255 = scmp.eq.s32.totalorder %s39, 1
      %p256 = por %p254, %p255
      %p258 = scmp.ne.s32.totalorder %s243, %s257
      %p259 = scmp.eq.s32.totalorder %s39, 0
      %p260 = por %p258, %p259
      %s262 = sadd.s32 %s261, 1
      %p265 = scmp.eq.s32.totalorder %s33, 1
      %p266 = scmp.ne.s32.totalorder %s261, %s263
      %p267 = scmp.eq.s32.totalorder %s33, 0
      %p268 = por %p266, %p267
      %p269 = scmp.ne.s32.totalorder %s261, %s263
      %p270 = scmp.eq.s32.totalorder %s38, 1
      %p271 = por %p269, %p270
      %p272 = scmp.ne.s32.totalorder %s263, %s264
      %p273 = scmp.eq.s32.totalorder %s38, 0
      %p274 = por %p272, %p273
      %p275 = scmp.ne.s32.totalorder %s263, %s264
      %p276 = scmp.eq.s32.totalorder %s39, 1
      %p277 = por %p275, %p276
      %p279 = scmp.ne.s32.totalorder %s264, %s278
      %p280 = scmp.eq.s32.totalorder %s39, 0
      %p281 = por %p279, %p280
      %s283 = sadd.s32 %s282, 1
      %p286 = scmp.eq.s32.totalorder %s33, 1
      %p287 = scmp.ne.s32.totalorder %s282, %s284
      %p288 = scmp.eq.s32.totalorder %s33, 0
      %p289 = por %p287, %p288
      %p290 = scmp.ne.s32.totalorder %s282, %s284
      %p291 = scmp.eq.s32.totalorder %s38, 1
      %p292 = por %p290, %p291
      %p293 = scmp.ne.s32.totalorder %s284, %s285
      %p294 = scmp.eq.s32.totalorder %s38, 0
      %p295 = por %p293, %p294
      %p296 = scmp.ne.s32.totalorder %s284, %s285
      %p297 = scmp.eq.s32.totalorder %s39, 1
      %p298 = por %p296, %p297
      %p300 = scmp.ne.s32.totalorder %s285, %s299
      %p301 = scmp.eq.s32.totalorder %s39, 0
      %p302 = por %p300, %p301
      %s304 = sadd.s32 %s303, 1
      %p307 = scmp.eq.s32.totalorder %s33, 1
      %p308 = scmp.ne.s32.totalorder %s303, %s305
      %p309 = scmp.eq.s32.totalorder %s33, 0
      %p310 = por %p308, %p309
      %p311 = scmp.ne.s32.totalorder %s303, %s305
      %p312 = scmp.eq.s32.totalorder %s38, 1
      %p313 = por %p311, %p312
      %p314 = scmp.ne.s32.totalorder %s305, %s306
      %p315 = scmp.eq.s32.totalorder %s38, 0
      %p316 = por %p314, %p315
      %p317 = scmp.ne.s32.totalorder %s305, %s306
      %p318 = scmp.eq.s32.totalorder %s39, 1
      %p319 = por %p317, %p318
      %p321 = scmp.ne.s32.totalorder %s306, %s320
      %p322 = scmp.eq.s32.totalorder %s39, 0
      %p323 = por %p321, %p322
      %s325 = sadd.s32 %s324, 1
      %p328 = scmp.eq.s32.totalorder %s33, 1
      %p329 = scmp.ne.s32.totalorder %s324, %s326
      %p330 = scmp.eq.s32.totalorder %s33, 0
      %p331 = por %p329, %p330
      %p332 = scmp.ne.s32.totalorder %s324, %s326
      %p333 = scmp.eq.s32.totalorder %s38, 1
      %p334 = por %p332, %p333
      %p335 = scmp.ne.s32.totalorder %s326, %s327
      %p336 = scmp.eq.s32.totalorder %s38, 0
      %p337 = por %p335, %p336
      %p338 = scmp.ne.s32.totalorder %s326, %s327
      %p339 = scmp.eq.s32.totalorder %s39, 1
      %p340 = por %p338, %p339
      %p342 = scmp.ne.s32.totalorder %s327, %s341
      %p343 = scmp.eq.s32.totalorder %s39, 0
      %p344 = por %p342, %p343
      %s346 = sadd.s32 %s345, 1
      %p349 = scmp.eq.s32.totalorder %s33, 1
      %p350 = scmp.ne.s32.totalorder %s345, %s347
      %p351 = scmp.eq.s32.totalorder %s33, 0
      %p352 = por %p350, %p351
      %p353 = scmp.ne.s32.totalorder %s345, %s347
      %p354 = scmp.eq.s32.totalorder %s38, 1
      %p355 = por %p353, %p354
      %p356 = scmp.ne.s32.totalorder %s347, %s348
      %p357 = scmp.eq.s32.totalorder %s38, 0
      %p358 = por %p356, %p357
      %p359 = scmp.ne.s32.totalorder %s347, %s348
      %p360 = scmp.eq.s32.totalorder %s39, 1
      %p361 = por %p359, %p360
      %p363 = scmp.ne.s32.totalorder %s348, %s362
      %p364 = scmp.eq.s32.totalorder %s39, 0
      %p365 = por %p363, %p364
      %s367 = sadd.s32 %s366, 1
      %p370 = scmp.eq.s32.totalorder %s33, 1
      %p371 = scmp.ne.s32.totalorder %s366, %s368
      %p372 = scmp.eq.s32.totalorder %s33, 0
      %p373 = por %p371, %p372
      %p374 = scmp.ne.s32.totalorder %s366, %s368
      %p375 = scmp.eq.s32.totalorder %s38, 1
      %p376 = por %p374, %p375
      %p377 = scmp.ne.s32.totalorder %s368, %s369
      %p378 = scmp.eq.s32.totalorder %s38, 0
      %p379 = por %p377, %p378
      %p380 = scmp.ne.s32.totalorder %s368, %s369
      %p381 = scmp.eq.s32.totalorder %s39, 1
      %p382 = por %p380, %p381
      %p384 = scmp.ne.s32.totalorder %s369, %s383
      %p385 = scmp.eq.s32.totalorder %s39, 0
      %p386 = por %p384, %p385
      %s388 = sadd.s32 %s387, 1
      %p391 = scmp.eq.s32.totalorder %s33, 1
      %p392 = scmp.ne.s32.totalorder %s387, %s389
      %p393 = scmp.eq.s32.totalorder %s33, 0
      %p394 = por %p392, %p393
      %p395 = scmp.ne.s32.totalorder %s387, %s389
      %p396 = scmp.eq.s32.totalorder %s38, 1
      %p397 = por %p395, %p396
      %p398 = scmp.ne.s32.totalorder %s389, %s390
      %p399 = scmp.eq.s32.totalorder %s38, 0
      %p400 = por %p398, %p399
      %p401 = scmp.ne.s32.totalorder %s389, %s390
      %p402 = scmp.eq.s32.totalorder %s39, 1
      %p403 = por %p401, %p402
      %p405 = scmp.ne.s32.totalorder %s390, %s404
      %p406 = scmp.eq.s32.totalorder %s39, 0
      %p407 = por %p405, %p406
      %s409 = sadd.s32 %s408, 1
      %p412 = scmp.eq.s32.totalorder %s33, 1
      %p413 = scmp.ne.s32.totalorder %s408, %s410
      %p414 = scmp.eq.s32.totalorder %s33, 0
      %p415 = por %p413, %p414
      %p416 = scmp.ne.s32.totalorder %s408, %s410
      %p417 = scmp.eq.s32.totalorder %s38, 1
      %p418 = por %p416, %p417
      %p419 = scmp.ne.s32.totalorder %s410, %s411
      %p420 = scmp.eq.s32.totalorder %s38, 0
      %p421 = por %p419, %p420
      %p422 = scmp.ne.s32.totalorder %s410, %s411
      %p423 = scmp.eq.s32.totalorder %s39, 1
      %p424 = por %p422, %p423
      %p426 = scmp.ne.s32.totalorder %s411, %s425
      %p427 = scmp.eq.s32.totalorder %s39, 0
      %p428 = por %p426, %p427
      %s429 = ssub.s32 %s33, %s40
      %p430 = scmp.eq.s32.totalorder %s429, 0
      %s432 = sadd.s32 %s431, 1
      %s433 = scalar_select %p430, %s431, %s432
      %p436 = pneg %p430
      %p437 = scmp.eq.s32.totalorder %s33, 1
      %p438 = por %p436, %p437
      %p439 = scmp.ne.s32.totalorder %s431, %s434
      %p440 = scmp.eq.s32.totalorder %s33, 0
      %p441 = por %p439, %p440
      %p442 = scmp.ne.s32.totalorder %s431, %s434
      %p443 = scmp.eq.s32.totalorder %s38, 1
      %p444 = por %p442, %p443
      %p445 = scmp.ne.s32.totalorder %s434, %s435
      %p446 = scmp.eq.s32.totalorder %s38, 0
      %p447 = por %p445, %p446
      %p448 = scmp.ne.s32.totalorder %s434, %s435
      %p449 = scmp.eq.s32.totalorder %s39, 1
      %p450 = por %p448, %p449
      %p452 = scmp.ne.s32.totalorder %s435, %s451
      %p453 = scmp.eq.s32.totalorder %s39, 0
      %p454 = por %p452, %p453
      %s456 = sadd.s32 %s455, 1
      %p459 = scmp.eq.s32.totalorder %s33, 1
      %p460 = scmp.ne.s32.totalorder %s455, %s457
      %p461 = scmp.eq.s32.totalorder %s33, 0
      %p462 = por %p460, %p461
      %p463 = scmp.ne.s32.totalorder %s455, %s457
      %p464 = scmp.eq.s32.totalorder %s38, 1
      %p465 = por %p463, %p464
      %p466 = scmp.ne.s32.totalorder %s457, %s458
      %p467 = scmp.eq.s32.totalorder %s38, 0
      %p468 = por %p466, %p467
      %p469 = scmp.ne.s32.totalorder %s457, %s458
      %p470 = scmp.eq.s32.totalorder %s39, 1
      %p471 = por %p469, %p470
      %p473 = scmp.ne.s32.totalorder %s458, %s472
      %p474 = scmp.eq.s32.totalorder %s39, 0
      %p475 = por %p473, %p474
      %p476 = scmp.le.s32.totalorder 1, %s33
      %p477 = scmp.lt.s32.totalorder %s33, 3
      %p478 = pnand %p476, %p477
      %p479 = pneg %p478
      // Predicated region
      $region9: #{rnmt_plus_decoder_layer.1} parent=5 // pred_check
        _
      $region10: #{rnmt_plus_decoder_layer.1} parent=5 // pred_check_branch
        %481 = sbr.rel (%p478) target = $region12
      $region11: #{rnmt_plus_decoder_layer.1} parent=5 // pred_region
        %s482 = ssub.s32 %s33, 1
        // Predicated region
        $region13: #{rnmt_plus_decoder_layer.1} parent=11 // pred_check
          %p483 = pneg %p106
        $region14: #{rnmt_plus_decoder_layer.1} parent=11 // pred_check_branch
          %485 = sbr.rel (%p483) target = $region16
        $region15: #{rnmt_plus_decoder_layer.1} parent=11 // pred_region
          _
        $region16: #{rnmt_plus_decoder_layer.1} parent=11 // pred_fallthru
          _
        // Predicated region
        $region17: #{rnmt_plus_decoder_layer.1} parent=11 // pred_check
          %p486 = pneg %p127
        $region18: #{rnmt_plus_decoder_layer.1} parent=11 // pred_check_branch
          %488 = sbr.rel (%p486) target = $region20
        $region19: #{rnmt_plus_decoder_layer.1} parent=11 // pred_region
          _
        $region20: #{rnmt_plus_decoder_layer.1} parent=11 // pred_fallthru
          _
        // Predicated region
        $region21: #{rnmt_plus_decoder_layer.1} parent=11 // pred_check
          %p489 = pneg %p148
        $region22: #{rnmt_plus_decoder_layer.1} parent=11 // pred_check_branch
          %491 = sbr.rel (%p489) target = $region24
        $region23: #{rnmt_plus_decoder_layer.1} parent=11 // pred_region
          _
        $region24: #{rnmt_plus_decoder_layer.1} parent=11 // pred_fallthru
          _
        // Predicated region
        $region25: #{rnmt_plus_decoder_layer.1} parent=11 // pred_check
          %p492 = pneg %p169
        $region26: #{rnmt_plus_decoder_layer.1} parent=11 // pred_check_branch
          %494 = sbr.rel (%p492) target = $region28
        $region27: #{rnmt_plus_decoder_layer.1} parent=11 // pred_region
          %s496 = ssub.s32 512, 512
          %497 = vsyncadd [#allocation8], %s496
          %s498 = sshll.u32 [#allocation7], 4
          %s499 = int_to_ptr.vmem [resolvable:$true] %s498
          %504 = dma.hbm_to_vmem [thread:$0]  %s5, 512, %s499, [#allocation8], 128, 128, 8
        $region28: #{rnmt_plus_decoder_layer.1} parent=11 // pred_fallthru
          _
        // Predicated region
        $region29: #{rnmt_plus_decoder_layer.1} parent=11 // pred_check
          %p505 = pneg %p190
        $region30: #{rnmt_plus_decoder_layer.1} parent=11 // pred_check_branch
          %507 = sbr.rel (%p505) target = $region32
        $region31: #{rnmt_plus_decoder_layer.1} parent=11 // pred_region
          %s509 = ssub.s32 512, 512
          %510 = vsyncadd [#allocation11], %s509
          %s511 = sshll.u32 [#allocation10], 4
          %s512 = int_to_ptr.vmem [resolvable:$true] %s511
          %517 = dma.hbm_to_vmem [thread:$0]  %s6, 512, %s512, [#allocation11], 128, 128, 8
        $region32: #{rnmt_plus_decoder_layer.1} parent=11 // pred_fallthru
          _
        // Predicated region
        $region33: #{rnmt_plus_decoder_layer.1} parent=11 // pred_check
          %p518 = pneg %p211
        $region34: #{rnmt_plus_decoder_layer.1} parent=11 // pred_check_branch
          %520 = sbr.rel (%p518) target = $region36
        $region35: #{rnmt_plus_decoder_layer.1} parent=11 // pred_region
          %s522 = ssub.s32 512, 512
          %523 = vsyncadd [#allocation11], %s522
          %s524 = sshll.u32 [#allocation12], 4
          %s525 = int_to_ptr.vmem [resolvable:$true] %s524
          %530 = dma.hbm_to_vmem [thread:$0]  %s7, 512, %s525, [#allocation11], 128, 128, 8
        $region36: #{rnmt_plus_decoder_layer.1} parent=11 // pred_fallthru
          _
        // Predicated region
        $region37: #{rnmt_plus_decoder_layer.1} parent=11 // pred_check
          %p531 = pneg %p232
        $region38: #{rnmt_plus_decoder_layer.1} parent=11 // pred_check_branch
          %533 = sbr.rel (%p531) target = $region40
        $region39: #{rnmt_plus_decoder_layer.1} parent=11 // pred_region
          _
        $region40: #{rnmt_plus_decoder_layer.1} parent=11 // pred_fallthru
          _
        // Predicated region
        $region41: #{rnmt_plus_decoder_layer.1} parent=11 // pred_check
          %p534 = pneg %p253
        $region42: #{rnmt_plus_decoder_layer.1} parent=11 // pred_check_branch
          %536 = sbr.rel (%p534) target = $region44
        $region43: #{rnmt_plus_decoder_layer.1} parent=11 // pred_region
          %s538 = ssub.s32 512, 512
          %539 = vsyncadd [#allocation14], %s538
          %s540 = sshll.u32 [#allocation13], 4
          %s541 = int_to_ptr.vmem [resolvable:$true] %s540
          %546 = dma.hbm_to_vmem [thread:$0]  %s9, 512, %s541, [#allocation14], 128, 128, 8
        $region44: #{rnmt_plus_decoder_layer.1} parent=11 // pred_fallthru
          _
        // Predicated region
        $region45: #{rnmt_plus_decoder_layer.1} parent=11 // pred_check
          %p547 = pneg %p274
        $region46: #{rnmt_plus_decoder_layer.1} parent=11 // pred_check_branch
          %549 = sbr.rel (%p547) target = $region48
        $region47: #{rnmt_plus_decoder_layer.1} parent=11 // pred_region
          %s551 = ssub.s32 512, 512
          %552 = vsyncadd [#allocation14], %s551
          %s553 = sshll.u32 [#allocation15], 4
          %s554 = int_to_ptr.vmem [resolvable:$true] %s553
          %559 = dma.hbm_to_vmem [thread:$0]  %s10, 512, %s554, [#allocation14], 128, 128, 8
        $region48: #{rnmt_plus_decoder_layer.1} parent=11 // pred_fallthru
          _
        // Predicated region
        $region49: #{rnmt_plus_decoder_layer.1} parent=11 // pred_check
          %p560 = pneg %p295
        $region50: #{rnmt_plus_decoder_layer.1} parent=11 // pred_check_branch
          %562 = sbr.rel (%p560) target = $region52
        $region51: #{rnmt_plus_decoder_layer.1} parent=11 // pred_region
          _
        $region52: #{rnmt_plus_decoder_layer.1} parent=11 // pred_fallthru
          _
        // Predicated region
        $region53: #{rnmt_plus_decoder_layer.1} parent=11 // pred_check
          %p563 = pneg %p316
        $region54: #{rnmt_plus_decoder_layer.1} parent=11 // pred_check_branch
          %565 = sbr.rel (%p563) target = $region56
        $region55: #{rnmt_plus_decoder_layer.1} parent=11 // pred_region
          %s567 = ssub.s32 16, 16
          %568 = vsyncadd [#allocation17], %s567
          %s570 = sshll.u32 [#allocation16], 4
          %s571 = int_to_ptr.vmem [resolvable:$true] %s570
          %573 = dma.hbm_to_vmem [thread:$0]  %s12, 16, %s571, [#allocation17]
        $region56: #{rnmt_plus_decoder_layer.1} parent=11 // pred_fallthru
          _
        // Predicated region
        $region57: #{rnmt_plus_decoder_layer.1} parent=11 // pred_check
          %p574 = pneg %p337
        $region58: #{rnmt_plus_decoder_layer.1} parent=11 // pred_check_branch
          %576 = sbr.rel (%p574) target = $region60
        $region59: #{rnmt_plus_decoder_layer.1} parent=11 // pred_region
          %s578 = ssub.s32 16, 16
          %579 = vsyncadd [#allocation17], %s578
          %s581 = sshll.u32 [#allocation18], 4
          %s582 = int_to_ptr.vmem [resolvable:$true] %s581
          %584 = dma.hbm_to_vmem [thread:$0]  %s13, 16, %s582, [#allocation17]
        $region60: #{rnmt_plus_decoder_layer.1} parent=11 // pred_fallthru
          _
        // Predicated region
        $region61: #{rnmt_plus_decoder_layer.1} parent=11 // pred_check
          %p585 = pneg %p358
        $region62: #{rnmt_plus_decoder_layer.1} parent=11 // pred_check_branch
          %587 = sbr.rel (%p585) target = $region64
        $region63: #{rnmt_plus_decoder_layer.1} parent=11 // pred_region
          %s589 = ssub.s32 16, 16
          %590 = vsyncadd [#allocation20], %s589
          %s592 = sshll.u32 [#allocation19], 4
          %s593 = int_to_ptr.vmem [resolvable:$true] %s592
          %595 = dma.hbm_to_vmem [thread:$0]  %s14, 16, %s593, [#allocation20]
        $region64: #{rnmt_plus_decoder_layer.1} parent=11 // pred_fallthru
          _
        // Predicated region
        $region65: #{rnmt_plus_decoder_layer.1} parent=11 // pred_check
          %p596 = pneg %p379
        $region66: #{rnmt_plus_decoder_layer.1} parent=11 // pred_check_branch
          %598 = sbr.rel (%p596) target = $region68
        $region67: #{rnmt_plus_decoder_layer.1} parent=11 // pred_region
          _
        $region68: #{rnmt_plus_decoder_layer.1} parent=11 // pred_fallthru
          _
        // Predicated region
        $region69: #{rnmt_plus_decoder_layer.1} parent=11 // pred_check
          %p599 = pneg %p400
        $region70: #{rnmt_plus_decoder_layer.1} parent=11 // pred_check_branch
          %601 = sbr.rel (%p599) target = $region72
        $region71: #{rnmt_plus_decoder_layer.1} parent=11 // pred_region
          %s603 = ssub.s32 16, 16
          %604 = vsyncadd [#allocation20], %s603
          %s606 = sshll.u32 [#allocation21], 4
          %s607 = int_to_ptr.vmem [resolvable:$true] %s606
          %609 = dma.hbm_to_vmem [thread:$0]  %s16, 16, %s607, [#allocation20]
        $region72: #{rnmt_plus_decoder_layer.1} parent=11 // pred_fallthru
          _
        // Predicated region
        $region73: #{rnmt_plus_decoder_layer.1} parent=11 // pred_check
          %p610 = pneg %p421
        $region74: #{rnmt_plus_decoder_layer.1} parent=11 // pred_check_branch
          %612 = sbr.rel (%p610) target = $region76
        $region75: #{rnmt_plus_decoder_layer.1} parent=11 // pred_region
          %s614 = ssub.s32 16, 16
          %615 = vsyncadd [#allocation23], %s614
          %s617 = sshll.u32 [#allocation22], 4
          %s618 = int_to_ptr.vmem [resolvable:$true] %s617
          %620 = dma.hbm_to_vmem [thread:$0]  %s17, 16, %s618, [#allocation23]
        $region76: #{rnmt_plus_decoder_layer.1} parent=11 // pred_fallthru
          _
      $region12: #{rnmt_plus_decoder_layer.1} parent=5 // pred_fallthru
        _
      %p621 = scmp.lt.s32.totalorder %s33, 2
      // Predicated region
      $region77: #{rnmt_plus_decoder_layer.1} parent=5 // pred_check
        %p622 = pneg %p621
      $region78: #{rnmt_plus_decoder_layer.1} parent=5 // pred_check_branch
        %624 = sbr.rel (%p622) target = $region80
      $region79: #{rnmt_plus_decoder_layer.1} parent=5 // pred_region
        // Predicated region
        $region81: #{rnmt_plus_decoder_layer.1} parent=79 // pred_check
          %p625 = pneg %p53
        $region82: #{rnmt_plus_decoder_layer.1} parent=79 // pred_check_branch
          %627 = sbr.rel (%p625) target = $region84
        $region83: #{rnmt_plus_decoder_layer.1} parent=79 // pred_region
          %p628 = scmp.lt.s32.totalorder %s33, 1
          %s629 = scalar_select %p628, %s33, 1
          %s630 = smul.addr %s629, 8
          %s631 = scalar_lea.vmem %s0, %s630
        $region84: #{rnmt_plus_decoder_layer.1} parent=79 // pred_fallthru
          _
        // Predicated region
        $region85: #{rnmt_plus_decoder_layer.1} parent=79 // pred_check
          %p632 = pneg %p79
        $region86: #{rnmt_plus_decoder_layer.1} parent=79 // pred_check_branch
          %634 = sbr.rel (%p632) target = $region88
        $region87: #{rnmt_plus_decoder_layer.1} parent=79 // pred_region
          %p635 = scmp.lt.s32.totalorder %s33, 1
          %s636 = scalar_select %p635, %s33, 1
          %s637 = smul.addr %s636, 8
          %s638 = scalar_lea.vmem %s1, %s637
        $region88: #{rnmt_plus_decoder_layer.1} parent=79 // pred_fallthru
          _
      $region80: #{rnmt_plus_decoder_layer.1} parent=5 // pred_fallthru
        _
      %p639 = scmp.le.s32.totalorder 1, %s33
      %p640 = scmp.lt.s32.totalorder %s33, 3
      %p641 = pnand %p639, %p640
      %p642 = pneg %p641
      // Predicated region
      $region89: #{rnmt_plus_decoder_layer.1} parent=5 // pred_check
        _
      $region90: #{rnmt_plus_decoder_layer.1} parent=5 // pred_check_branch
        %644 = sbr.rel (%p641) target = $region92
      $region91: #{rnmt_plus_decoder_layer.1} parent=5 // pred_region
        %s645 = ssub.s32 %s33, 1
        // Predicated region
        $region93: #{rnmt_plus_decoder_layer.1} parent=91 // pred_check
          %p646 = pneg %p169
        $region94: #{rnmt_plus_decoder_layer.1} parent=91 // pred_check_branch
          %648 = sbr.rel (%p646) target = $region96
        $region95: #{rnmt_plus_decoder_layer.1} parent=91 // pred_region
          %649 = dma.done [#allocation8], 512
        $region96: #{rnmt_plus_decoder_layer.1} parent=91 // pred_fallthru
          _
        // Predicated region
        $region97: #{rnmt_plus_decoder_layer.1} parent=91 // pred_check
          %p650 = pneg %p190
        $region98: #{rnmt_plus_decoder_layer.1} parent=91 // pred_check_branch
          %652 = sbr.rel (%p650) target = $region100
        $region99: #{rnmt_plus_decoder_layer.1} parent=91 // pred_region
          %653 = dma.done [#allocation11], 512
        $region100: #{rnmt_plus_decoder_layer.1} parent=91 // pred_fallthru
          _
        // Predicated region
        $region101: #{rnmt_plus_decoder_layer.1} parent=91 // pred_check
          %p654 = pneg %p211
        $region102: #{rnmt_plus_decoder_layer.1} parent=91 // pred_check_branch
          %656 = sbr.rel (%p654) target = $region104
        $region103: #{rnmt_plus_decoder_layer.1} parent=91 // pred_region
          %657 = dma.done [#allocation11], 512
        $region104: #{rnmt_plus_decoder_layer.1} parent=91 // pred_fallthru
          _
        // Predicated region
        $region105: #{rnmt_plus_decoder_layer.1} parent=91 // pred_check
          %p658 = pneg %p253
        $region106: #{rnmt_plus_decoder_layer.1} parent=91 // pred_check_branch
          %660 = sbr.rel (%p658) target = $region108
        $region107: #{rnmt_plus_decoder_layer.1} parent=91 // pred_region
          %661 = dma.done [#allocation14], 512
        $region108: #{rnmt_plus_decoder_layer.1} parent=91 // pred_fallthru
          _
        // Predicated region
        $region109: #{rnmt_plus_decoder_layer.1} parent=91 // pred_check
          %p662 = pneg %p274
        $region110: #{rnmt_plus_decoder_layer.1} parent=91 // pred_check_branch
          %664 = sbr.rel (%p662) target = $region112
        $region111: #{rnmt_plus_decoder_layer.1} parent=91 // pred_region
          %665 = dma.done [#allocation14], 512
        $region112: #{rnmt_plus_decoder_layer.1} parent=91 // pred_fallthru
          _
        // Predicated region
        $region113: #{rnmt_plus_decoder_layer.1} parent=91 // pred_check
          %p666 = pneg %p316
        $region114: #{rnmt_plus_decoder_layer.1} parent=91 // pred_check_branch
          %668 = sbr.rel (%p666) target = $region116
        $region115: #{rnmt_plus_decoder_layer.1} parent=91 // pred_region
          %669 = dma.done [#allocation17], 16
        $region116: #{rnmt_plus_decoder_layer.1} parent=91 // pred_fallthru
          _
        // Predicated region
        $region117: #{rnmt_plus_decoder_layer.1} parent=91 // pred_check
          %p670 = pneg %p337
        $region118: #{rnmt_plus_decoder_layer.1} parent=91 // pred_check_branch
          %672 = sbr.rel (%p670) target = $region120
        $region119: #{rnmt_plus_decoder_layer.1} parent=91 // pred_region
          %673 = dma.done [#allocation17], 16
        $region120: #{rnmt_plus_decoder_layer.1} parent=91 // pred_fallthru
          _
        // Predicated region
        $region121: #{rnmt_plus_decoder_layer.1} parent=91 // pred_check
          %p674 = pneg %p358
        $region122: #{rnmt_plus_decoder_layer.1} parent=91 // pred_check_branch
          %676 = sbr.rel (%p674) target = $region124
        $region123: #{rnmt_plus_decoder_layer.1} parent=91 // pred_region
          %677 = dma.done [#allocation20], 16
        $region124: #{rnmt_plus_decoder_layer.1} parent=91 // pred_fallthru
          _
        // Predicated region
        $region125: #{rnmt_plus_decoder_layer.1} parent=91 // pred_check
          %p678 = pneg %p400
        $region126: #{rnmt_plus_decoder_layer.1} parent=91 // pred_check_branch
          %680 = sbr.rel (%p678) target = $region128
        $region127: #{rnmt_plus_decoder_layer.1} parent=91 // pred_region
          %681 = dma.done [#allocation20], 16
        $region128: #{rnmt_plus_decoder_layer.1} parent=91 // pred_fallthru
          _
        // Predicated region
        $region129: #{rnmt_plus_decoder_layer.1} parent=91 // pred_check
          %p682 = pneg %p421
        $region130: #{rnmt_plus_decoder_layer.1} parent=91 // pred_check_branch
          %684 = sbr.rel (%p682) target = $region132
        $region131: #{rnmt_plus_decoder_layer.1} parent=91 // pred_region
          %685 = dma.done [#allocation23], 16
        $region132: #{rnmt_plus_decoder_layer.1} parent=91 // pred_fallthru
          _
        %p686 = scmp.lt.s32.totalorder %s38, 1
        %s687 = scalar_select %p686, %s38, 1
        %s688 = smul.addr %s687, 8
        %s689 = scalar_lea.vmem %s0, %s688
        %p690 = pneg %p59
        %p691 = pneg %p56
        %p692 = scmp.lt.s32.totalorder %s38, 1
        %s693 = scalar_select %p692, %s38, 1
        %s694 = smul.addr %s693, 8
        %s695 = scalar_lea.vmem %s1, %s694
        %p696 = pneg %p85
        %p697 = pneg %p82
        %p698 = pneg %p106
        %p699 = pneg %p103
        %p700 = pneg %p127
        %p701 = pneg %p124
        %p702 = pneg %p148
        %p703 = pneg %p145
        %p704 = pneg %p169
        %p705 = pneg %p166
        %p706 = pneg %p190
        %p707 = pneg %p187
        %p708 = pneg %p211
        %p709 = pneg %p208
        %p710 = pneg %p232
        %p711 = pneg %p229
        %p712 = pneg %p253
        %p713 = pneg %p250
        %p714 = pneg %p274
        %p715 = pneg %p271
        %p716 = pneg %p295
        %p717 = pneg %p292
        %p718 = pneg %p316
        %p719 = pneg %p313
        %p720 = pneg %p337
        %p721 = pneg %p334
        %p722 = pneg %p358
        %p723 = pneg %p355
        %p724 = pneg %p379
        %p725 = pneg %p376
        %p726 = pneg %p400
        %p727 = pneg %p397
        %p728 = pneg %p421
        %p729 = pneg %p418
        %p730 = pneg %p447
        %p731 = pneg %p444
        %p732 = scmp.lt.s32.totalorder %s38, 1
        %s733 = scalar_select %p732, %s38, 1
        %s734 = smul.addr %s733, 8
        %s735 = scalar_lea.vmem %s18, %s734
        %p736 = pneg %p468
        %p737 = pneg %p465
        %p738 = scmp.lt.s32.totalorder %s38, 1
        %s739 = scalar_select %p738, %s38, 1
        %s740 = smul.addr %s739, 8
        %s741 = scalar_lea.vmem %s0, %s740
        %p742 = scmp.lt.s32.totalorder %s38, 1
        %s743 = scalar_select %p742, %s38, 1
        %s744 = smul.addr %s743, 8
        %s745 = scalar_lea.vmem %s1, %s744
        %p746 = scmp.lt.s32.totalorder %s38, 1
        %s747 = scalar_select %p746, %s38, 1
        %s748 = smul.addr %s747, 8
        %s749 = scalar_lea.vmem %s18, %s748
        %p750 = scmp.eq.s32.totalorder %s38, 0
        // Predicated region
        $region133: #{rnmt_plus_decoder_layer.1} parent=91 // pred_check
          %p751 = pneg %p750
        $region134: #{rnmt_plus_decoder_layer.1} parent=91 // pred_check_branch
          %753 = sbr.rel (%p751) target = $region136
        $region135: #{rnmt_plus_decoder_layer.1} parent=91 // pred_region
          %v754 = vld [vmem:[%s2] sm:$0x3]
          %vm755 = vcmask 254976
          %756 = vst.msk [vmem:[#allocation2] sm:$0x3] %vm755, %v754
        $region136: #{rnmt_plus_decoder_layer.1} parent=91 // pred_fallthru
          _
        %v757 = vld [vmem:[%s741] sm:$0xff]
        %v758 = vld [vmem:[%s745] sm:$0xff]
        %v759 = vld [vmem:[%s3] sm:$0xff]
        %v760 = vld [vmem:[%s3 + $0x8] sm:$0xff]
        %v761 = vld [vmem:[%s3 + $0x10] sm:$0xff]
        %v762 = vld [vmem:[%s3 + $0x18] sm:$0xff]
        %v763 = vld [vmem:[%s4] sm:$0xff]
        %v764 = vld [vmem:[%s4 + $0x8] sm:$0xff]
        %v765 = vld [vmem:[%s4 + $0x10] sm:$0xff]
        %v766 = vld [vmem:[%s4 + $0x18] sm:$0xff]
        %vm767 = vcmask 261120
        %v769 = vsel %vm767, %v758, 0
        %771 = vmatprep.subr.mxu0 0.0
        %772 = vmatpush1.msra.mxu0 %v763
        %773 = vmatprep.subr.mxu0 0.0
        %774 = vmatpush1.msra.mxu0 %v764
        %775 = vmatprep.subr.mxu0 0.0
        %776 = vmatpush1.msra.mxu0 %v765
        %777 = vmatprep.subr.mxu0 0.0
        %778 = vmatpush1.msra.mxu0 %v766
        %779 = vmatprep.subr.mxu0 0.0
        %780 = vmatpush1.msra.mxu0 0.0
        %781 = vmatprep.subr.mxu0 0.0
        %782 = vmatpush1.msra.mxu0 0.0
        %783 = vmatprep.subr.mxu0 0.0
        %784 = vmatpush1.msra.mxu0 0.0
        %785 = vmatprep.subr.mxu0 0.0
        %786 = vmatpush1.msra.mxu0 0.0
        %787 = vmatprep.subr.mxu0 0.0
        %788 = vmatpush1.msra.mxu0 0.0
        %789 = vmatprep.subr.mxu0 0.0
        %790 = vmatpush1.msra.mxu0 0.0
        %791 = vmatprep.subr.mxu0 0.0
        %792 = vmatpush1.msra.mxu0 0.0
        %793 = vmatprep.subr.mxu0 0.0
        %794 = vmatpush1.msra.mxu0 0.0
        %795 = vmatprep.subr.mxu0 0.0
        %796 = vmatpush1.msra.mxu0 0.0
        %797 = vmatprep.subr.mxu0 0.0
        %798 = vmatpush1.msra.mxu0 0.0
        %799 = vmatprep.subr.mxu0 0.0
        %800 = vmatpush1.msra.mxu0 0.0
        %801 = vmatprep.subr.mxu0 0.0
        %802 = vmatpush1.msra.mxu0 0.0
        %803 = vmatprep.subr.mxu0 0.0
        %804 = vmatpush1.msra.mxu0 0.0
        %805 = vmatprep.subr.mxu0 0.0
        %806 = vmatpush1.msra.mxu0 0.0
        %807 = vmatprep.subr.mxu0 0.0
        %808 = vmatpush1.msra.mxu0 0.0
        %809 = vmatprep.subr.mxu0 0.0
        %810 = vmatpush1.msra.mxu0 0.0
        %811 = vmatprep.subr.mxu0 0.0
        %812 = vmatpush1.msra.mxu0 0.0
        %813 = vmatprep.subr.mxu0 0.0
        %814 = vmatpush1.msra.mxu0 0.0
        %815 = vmatprep.subr.mxu0 0.0
        %816 = vmatpush1.msra.mxu0 0.0
        %817 = vmatprep.subr.mxu0 0.0
        %818 = vmatpush1.msra.mxu0 0.0
        %819 = vmatprep.subr.mxu0 0.0
        %820 = vmatpush1.msra.mxu0 0.0
        %821 = vmatprep.subr.mxu0 0.0
        %822 = vmatpush1.msra.mxu0 0.0
        %823 = vmatprep.subr.mxu0 0.0
        %824 = vmatpush1.msra.mxu0 0.0
        %825 = vmatprep.subr.mxu0 0.0
        %826 = vmatpush1.msra.mxu0 0.0
        %827 = vmatprep.subr.mxu0 0.0
        %828 = vmatpush1.msra.mxu0 0.0
        %829 = vmatprep.subr.mxu0 0.0
        %830 = vmatpush1.msra.mxu0 0.0
        %831 = vmatprep.subr.mxu0 0.0
        %832 = vmatpush1.msra.mxu0 0.0
        %833 = vmatprep.subr.mxu0 0.0
        %834 = vmatpush1.msra.mxu0 0.0
        %835 = vmatprep.mubr.f32.mxu0 0.0
        %836 = vmatmul.mubr.f32.gmra.mrb[0].mxu0 %v769
        %v837 = vpop.f32.mrb[0].mxu0
        %v838 = vadd.f32 0.0, %v837
        %v839 = vpop.f32.mrb[0].mxu0
        %840 = vdwg.mxu0
        %v842 = vsel %vm767, %v757, 0
        %844 = vmatprep.subr.mxu0 0.0
        %845 = vmatpush1.msra.mxu0 %v759
        %846 = vmatprep.subr.mxu0 0.0
        %847 = vmatpush1.msra.mxu0 %v760
        %848 = vmatprep.subr.mxu0 0.0
        %849 = vmatpush1.msra.mxu0 %v761
        %850 = vmatprep.subr.mxu0 0.0
        %851 = vmatpush1.msra.mxu0 %v762
        %852 = vmatprep.subr.mxu0 0.0
        %853 = vmatpush1.msra.mxu0 0.0
        %854 = vmatprep.subr.mxu0 0.0
        %855 = vmatpush1.msra.mxu0 0.0
        %856 = vmatprep.subr.mxu0 0.0
        %857 = vmatpush1.msra.mxu0 0.0
        %858 = vmatprep.subr.mxu0 0.0
        %859 = vmatpush1.msra.mxu0 0.0
        %860 = vmatprep.subr.mxu0 0.0
        %861 = vmatpush1.msra.mxu0 0.0
        %862 = vmatprep.subr.mxu0 0.0
        %863 = vmatpush1.msra.mxu0 0.0
        %864 = vmatprep.subr.mxu0 0.0
        %865 = vmatpush1.msra.mxu0 0.0
        %866 = vmatprep.subr.mxu0 0.0
        %867 = vmatpush1.msra.mxu0 0.0
        %868 = vmatprep.subr.mxu0 0.0
        %869 = vmatpush1.msra.mxu0 0.0
        %870 = vmatprep.subr.mxu0 0.0
        %871 = vmatpush1.msra.mxu0 0.0
        %872 = vmatprep.subr.mxu0 0.0
        %873 = vmatpush1.msra.mxu0 0.0
        %874 = vmatprep.subr.mxu0 0.0
        %875 = vmatpush1.msra.mxu0 0.0
        %876 = vmatprep.subr.mxu0 0.0
        %877 = vmatpush1.msra.mxu0 0.0
        %878 = vmatprep.subr.mxu0 0.0
        %879 = vmatpush1.msra.mxu0 0.0
        %880 = vmatprep.subr.mxu0 0.0
        %881 = vmatpush1.msra.mxu0 0.0
        %882 = vmatprep.subr.mxu0 0.0
        %883 = vmatpush1.msra.mxu0 0.0
        %884 = vmatprep.subr.mxu0 0.0
        %885 = vmatpush1.msra.mxu0 0.0
        %886 = vmatprep.subr.mxu0 0.0
        %887 = vmatpush1.msra.mxu0 0.0
        %888 = vmatprep.subr.mxu0 0.0
        %889 = vmatpush1.msra.mxu0 0.0
        %890 = vmatprep.subr.mxu0 0.0
        %891 = vmatpush1.msra.mxu0 0.0
        %892 = vmatprep.subr.mxu0 0.0
        %893 = vmatpush1.msra.mxu0 0.0
        %894 = vmatprep.subr.mxu0 0.0
        %895 = vmatpush1.msra.mxu0 0.0
        %896 = vmatprep.subr.mxu0 0.0
        %897 = vmatpush1.msra.mxu0 0.0
        %898 = vmatprep.subr.mxu0 0.0
        %899 = vmatpush1.msra.mxu0 0.0
        %900 = vmatprep.subr.mxu0 0.0
        %901 = vmatpush1.msra.mxu0 0.0
        %902 = vmatprep.subr.mxu0 0.0
        %903 = vmatpush1.msra.mxu0 0.0
        %904 = vmatprep.subr.mxu0 0.0
        %905 = vmatpush1.msra.mxu0 0.0
        %906 = vmatprep.subr.mxu0 0.0
        %907 = vmatpush1.msra.mxu0 0.0
        %908 = vmatprep.mubr.f32.mxu0 0.0
        %909 = vmatmul.mubr.f32.gmra.mrb[0].mxu0 %v842
        %v910 = vpop.f32.mrb[0].mxu0
        %v911 = vadd.f32 %v838, %v910
        %v912 = vpop.f32.mrb[0].mxu0
        %913 = vdwg.mxu0
        %v914 = vld [vmem:[%s11] sm:$0x1]
        %v916 = vlaneseq
        %v917 = vshrl.u32 %v916, 7
        %v918 = vsub.s32 0, %v917
        %v919 = vrot.slane %v914, %v918
        %v921 = vadd.f32 %v911, %v919
        %v922 = vld [vmem:[#allocation7] sm:$0xff]
        %v923 = vld [vmem:[#allocation7 + $0x8] sm:$0xff]
        %v924 = vld [vmem:[#allocation7 + $0x10] sm:$0xff]
        %v925 = vld [vmem:[#allocation7 + $0x18] sm:$0xff]
        %v926 = vld [vmem:[#allocation16] sm:$0x1]
        %v928 = vlaneseq
        %v929 = vshrl.u32 %v928, 7
        %v930 = vsub.s32 0, %v929
        %v931 = vrot.slane %v926, %v930
        %v934 = vsel %vm767, %v921, 0
        %936 = vmatprep.subr.mxu0 0.0
        %937 = vmatpush1.msra.mxu0 %v922
        %938 = vmatprep.subr.mxu0 0.0
        %939 = vmatpush1.msra.mxu0 %v923
        %940 = vmatprep.subr.mxu0 0.0
        %941 = vmatpush1.msra.mxu0 %v924
        %942 = vmatprep.subr.mxu0 0.0
        %943 = vmatpush1.msra.mxu0 %v925
        %944 = vmatprep.subr.mxu0 0.0
        %945 = vmatpush1.msra.mxu0 0.0
        %946 = vmatprep.subr.mxu0 0.0
        %947 = vmatpush1.msra.mxu0 0.0
        %948 = vmatprep.subr.mxu0 0.0
        %949 = vmatpush1.msra.mxu0 0.0
        %950 = vmatprep.subr.mxu0 0.0
        %951 = vmatpush1.msra.mxu0 0.0
        %952 = vmatprep.subr.mxu0 0.0
        %953 = vmatpush1.msra.mxu0 0.0
        %954 = vmatprep.subr.mxu0 0.0
        %955 = vmatpush1.msra.mxu0 0.0
        %956 = vmatprep.subr.mxu0 0.0
        %957 = vmatpush1.msra.mxu0 0.0
        %958 = vmatprep.subr.mxu0 0.0
        %959 = vmatpush1.msra.mxu0 0.0
        %960 = vmatprep.subr.mxu0 0.0
        %961 = vmatpush1.msra.mxu0 0.0
        %962 = vmatprep.subr.mxu0 0.0
        %963 = vmatpush1.msra.mxu0 0.0
        %964 = vmatprep.subr.mxu0 0.0
        %965 = vmatpush1.msra.mxu0 0.0
        %966 = vmatprep.subr.mxu0 0.0
        %967 = vmatpush1.msra.mxu0 0.0
        %968 = vmatprep.subr.mxu0 0.0
        %969 = vmatpush1.msra.mxu0 0.0
        %970 = vmatprep.subr.mxu0 0.0
        %971 = vmatpush1.msra.mxu0 0.0
        %972 = vmatprep.subr.mxu0 0.0
        %973 = vmatpush1.msra.mxu0 0.0
        %974 = vmatprep.subr.mxu0 0.0
        %975 = vmatpush1.msra.mxu0 0.0
        %976 = vmatprep.subr.mxu0 0.0
        %977 = vmatpush1.msra.mxu0 0.0
        %978 = vmatprep.subr.mxu0 0.0
        %979 = vmatpush1.msra.mxu0 0.0
        %980 = vmatprep.subr.mxu0 0.0
        %981 = vmatpush1.msra.mxu0 0.0
        %982 = vmatprep.subr.mxu0 0.0
        %983 = vmatpush1.msra.mxu0 0.0
        %984 = vmatprep.subr.mxu0 0.0
        %985 = vmatpush1.msra.mxu0 0.0
        %986 = vmatprep.subr.mxu0 0.0
        %987 = vmatpush1.msra.mxu0 0.0
        %988 = vmatprep.subr.mxu0 0.0
        %989 = vmatpush1.msra.mxu0 0.0
        %990 = vmatprep.subr.mxu0 0.0
        %991 = vmatpush1.msra.mxu0 0.0
        %992 = vmatprep.subr.mxu0 0.0
        %993 = vmatpush1.msra.mxu0 0.0
        %994 = vmatprep.subr.mxu0 0.0
        %995 = vmatpush1.msra.mxu0 0.0
        %996 = vmatprep.subr.mxu0 0.0
        %997 = vmatpush1.msra.mxu0 0.0
        %998 = vmatprep.subr.mxu0 0.0
        %999 = vmatpush1.msra.mxu0 0.0
        %1000 = vmatprep.mubr.f32.mxu0 0.0
        %1001 = vmatmul.mubr.f32.gmra.mrb[0].mxu0 %v934
        %v1002 = vpop.f32.mrb[0].mxu0
        %v1003 = vadd.f32 %v931, %v1002
        %v1004 = vpop.f32.mrb[0].mxu0
        %1005 = vdwg.mxu0
        %1006 = vst.msk [vmem:[#allocation3] sm:$0xff] %vm767, %v1003
        %v1007 = vld [vmem:[#allocation10] sm:$0xff]
        %v1008 = vld [vmem:[#allocation10 + $0x8] sm:$0xff]
        %v1009 = vld [vmem:[#allocation10 + $0x10] sm:$0xff]
        %v1010 = vld [vmem:[#allocation10 + $0x18] sm:$0xff]
        %v1011 = vld [vmem:[#allocation18] sm:$0x1]
        %v1013 = vlaneseq
        %v1014 = vshrl.u32 %v1013, 7
        %v1015 = vsub.s32 0, %v1014
        %v1016 = vrot.slane %v1011, %v1015
        %1018 = vmatprep.subr.mxu0 0.0
        %1019 = vmatpush1.msra.mxu0 %v1007
        %1020 = vmatprep.subr.mxu0 0.0
        %1021 = vmatpush1.msra.mxu0 %v1008
        %1022 = vmatprep.subr.mxu0 0.0
        %1023 = vmatpush1.msra.mxu0 %v1009
        %1024 = vmatprep.subr.mxu0 0.0
        %1025 = vmatpush1.msra.mxu0 %v1010
        %1026 = vmatprep.subr.mxu0 0.0
        %1027 = vmatpush1.msra.mxu0 0.0
        %1028 = vmatprep.subr.mxu0 0.0
        %1029 = vmatpush1.msra.mxu0 0.0
        %1030 = vmatprep.subr.mxu0 0.0
        %1031 = vmatpush1.msra.mxu0 0.0
        %1032 = vmatprep.subr.mxu0 0.0
        %1033 = vmatpush1.msra.mxu0 0.0
        %1034 = vmatprep.subr.mxu0 0.0
        %1035 = vmatpush1.msra.mxu0 0.0
        %1036 = vmatprep.subr.mxu0 0.0
        %1037 = vmatpush1.msra.mxu0 0.0
        %1038 = vmatprep.subr.mxu0 0.0
        %1039 = vmatpush1.msra.mxu0 0.0
        %1040 = vmatprep.subr.mxu0 0.0
        %1041 = vmatpush1.msra.mxu0 0.0
        %1042 = vmatprep.subr.mxu0 0.0
        %1043 = vmatpush1.msra.mxu0 0.0
        %1044 = vmatprep.subr.mxu0 0.0
        %1045 = vmatpush1.msra.mxu0 0.0
        %1046 = vmatprep.subr.mxu0 0.0
        %1047 = vmatpush1.msra.mxu0 0.0
        %1048 = vmatprep.subr.mxu0 0.0
        %1049 = vmatpush1.msra.mxu0 0.0
        %1050 = vmatprep.subr.mxu0 0.0
        %1051 = vmatpush1.msra.mxu0 0.0
        %1052 = vmatprep.subr.mxu0 0.0
        %1053 = vmatpush1.msra.mxu0 0.0
        %1054 = vmatprep.subr.mxu0 0.0
        %1055 = vmatpush1.msra.mxu0 0.0
        %1056 = vmatprep.subr.mxu0 0.0
        %1057 = vmatpush1.msra.mxu0 0.0
        %1058 = vmatprep.subr.mxu0 0.0
        %1059 = vmatpush1.msra.mxu0 0.0
        %1060 = vmatprep.subr.mxu0 0.0
        %1061 = vmatpush1.msra.mxu0 0.0
        %1062 = vmatprep.subr.mxu0 0.0
        %1063 = vmatpush1.msra.mxu0 0.0
        %1064 = vmatprep.subr.mxu0 0.0
        %1065 = vmatpush1.msra.mxu0 0.0
        %1066 = vmatprep.subr.mxu0 0.0
        %1067 = vmatpush1.msra.mxu0 0.0
        %1068 = vmatprep.subr.mxu0 0.0
        %1069 = vmatpush1.msra.mxu0 0.0
        %1070 = vmatprep.subr.mxu0 0.0
        %1071 = vmatpush1.msra.mxu0 0.0
        %1072 = vmatprep.subr.mxu0 0.0
        %1073 = vmatpush1.msra.mxu0 0.0
        %1074 = vmatprep.subr.mxu0 0.0
        %1075 = vmatpush1.msra.mxu0 0.0
        %1076 = vmatprep.subr.mxu0 0.0
        %1077 = vmatpush1.msra.mxu0 0.0
        %1078 = vmatprep.subr.mxu0 0.0
        %1079 = vmatpush1.msra.mxu0 0.0
        %1080 = vmatprep.subr.mxu0 0.0
        %1081 = vmatpush1.msra.mxu0 0.0
        %1082 = vmatprep.mubr.f32.mxu0 0.0
        %1083 = vmatmul.mubr.f32.gmra.mrb[0].mxu0 %v934
        %v1084 = vpop.f32.mrb[0].mxu0
        %v1085 = vadd.f32 %v1016, %v1084
        %v1086 = vpop.f32.mrb[0].mxu0
        %1087 = vdwg.mxu0
        %1088 = vst.msk [vmem:[#allocation4] sm:$0xff] %vm767, %v1085
        %v1089 = vld [vmem:[#allocation12] sm:$0xff]
        %v1090 = vld [vmem:[#allocation12 + $0x8] sm:$0xff]
        %v1091 = vld [vmem:[#allocation12 + $0x10] sm:$0xff]
        %v1092 = vld [vmem:[#allocation12 + $0x18] sm:$0xff]
        %v1093 = vld [vmem:[#allocation19] sm:$0x1]
        %v1095 = vlaneseq
        %v1096 = vshrl.u32 %v1095, 7
        %v1097 = vsub.s32 0, %v1096
        %v1098 = vrot.slane %v1093, %v1097
        %1100 = vmatprep.subr.mxu0 0.0
        %1101 = vmatpush1.msra.mxu0 %v1089
        %1102 = vmatprep.subr.mxu0 0.0
        %1103 = vmatpush1.msra.mxu0 %v1090
        %1104 = vmatprep.subr.mxu0 0.0
        %1105 = vmatpush1.msra.mxu0 %v1091
        %1106 = vmatprep.subr.mxu0 0.0
        %1107 = vmatpush1.msra.mxu0 %v1092
        %1108 = vmatprep.subr.mxu0 0.0
        %1109 = vmatpush1.msra.mxu0 0.0
        %1110 = vmatprep.subr.mxu0 0.0
        %1111 = vmatpush1.msra.mxu0 0.0
        %1112 = vmatprep.subr.mxu0 0.0
        %1113 = vmatpush1.msra.mxu0 0.0
        %1114 = vmatprep.subr.mxu0 0.0
        %1115 = vmatpush1.msra.mxu0 0.0
        %1116 = vmatprep.subr.mxu0 0.0
        %1117 = vmatpush1.msra.mxu0 0.0
        %1118 = vmatprep.subr.mxu0 0.0
        %1119 = vmatpush1.msra.mxu0 0.0
        %1120 = vmatprep.subr.mxu0 0.0
        %1121 = vmatpush1.msra.mxu0 0.0
        %1122 = vmatprep.subr.mxu0 0.0
        %1123 = vmatpush1.msra.mxu0 0.0
        %1124 = vmatprep.subr.mxu0 0.0
        %1125 = vmatpush1.msra.mxu0 0.0
        %1126 = vmatprep.subr.mxu0 0.0
        %1127 = vmatpush1.msra.mxu0 0.0
        %1128 = vmatprep.subr.mxu0 0.0
        %1129 = vmatpush1.msra.mxu0 0.0
        %1130 = vmatprep.subr.mxu0 0.0
        %1131 = vmatpush1.msra.mxu0 0.0
        %1132 = vmatprep.subr.mxu0 0.0
        %1133 = vmatpush1.msra.mxu0 0.0
        %1134 = vmatprep.subr.mxu0 0.0
        %1135 = vmatpush1.msra.mxu0 0.0
        %1136 = vmatprep.subr.mxu0 0.0
        %1137 = vmatpush1.msra.mxu0 0.0
        %1138 = vmatprep.subr.mxu0 0.0
        %1139 = vmatpush1.msra.mxu0 0.0
        %1140 = vmatprep.subr.mxu0 0.0
        %1141 = vmatpush1.msra.mxu0 0.0
        %1142 = vmatprep.subr.mxu0 0.0
        %1143 = vmatpush1.msra.mxu0 0.0
        %1144 = vmatprep.subr.mxu0 0.0
        %1145 = vmatpush1.msra.mxu0 0.0
        %1146 = vmatprep.subr.mxu0 0.0
        %1147 = vmatpush1.msra.mxu0 0.0
        %1148 = vmatprep.subr.mxu0 0.0
        %1149 = vmatpush1.msra.mxu0 0.0
        %1150 = vmatprep.subr.mxu0 0.0
        %1151 = vmatpush1.msra.mxu0 0.0
        %1152 = vmatprep.subr.mxu0 0.0
        %1153 = vmatpush1.msra.mxu0 0.0
        %1154 = vmatprep.subr.mxu0 0.0
        %1155 = vmatpush1.msra.mxu0 0.0
        %1156 = vmatprep.subr.mxu0 0.0
        %1157 = vmatpush1.msra.mxu0 0.0
        %1158 = vmatprep.subr.mxu0 0.0
        %1159 = vmatpush1.msra.mxu0 0.0
        %1160 = vmatprep.subr.mxu0 0.0
        %1161 = vmatpush1.msra.mxu0 0.0
        %1162 = vmatprep.subr.mxu0 0.0
        %1163 = vmatpush1.msra.mxu0 0.0
        %1164 = vmatprep.mubr.f32.mxu0 0.0
        %1165 = vmatmul.mubr.f32.gmra.mrb[0].mxu0 %v934
        %v1166 = vpop.f32.mrb[0].mxu0
        %v1167 = vadd.f32 %v1098, %v1166
        %v1168 = vpop.f32.mrb[0].mxu0
        %1169 = vdwg.mxu0
        %1170 = vst.msk [vmem:[#allocation5] sm:$0xff] %vm767, %v1167
        %v1171 = vld [vmem:[%s8] sm:$0xff]
        %v1172 = vld [vmem:[%s8 + $0x8] sm:$0xff]
        %v1173 = vld [vmem:[%s8 + $0x10] sm:$0xff]
        %v1174 = vld [vmem:[%s8 + $0x18] sm:$0xff]
        %v1175 = vld [vmem:[#allocation13] sm:$0xff]
        %v1176 = vld [vmem:[#allocation13 + $0x8] sm:$0xff]
        %v1177 = vld [vmem:[#allocation13 + $0x10] sm:$0xff]
        %v1178 = vld [vmem:[#allocation13 + $0x18] sm:$0xff]
        %v1179 = vld [vmem:[#allocation15] sm:$0xff]
        %v1180 = vld [vmem:[#allocation15 + $0x8] sm:$0xff]
        %v1181 = vld [vmem:[#allocation15 + $0x10] sm:$0xff]
        %v1182 = vld [vmem:[#allocation15 + $0x18] sm:$0xff]
        %v1183 = vld [vmem:[%s15] sm:$0x1]
        %v1184 = vld [vmem:[#allocation2] sm:$0x3]
        %v1185 = vld [vmem:[#allocation3] sm:$0x3]
        %v1186 = vld [vmem:[#allocation4] sm:$0x3]
        %v1187 = vld [vmem:[#allocation5] sm:$0x3]
        %v1189 = vsel %vm767, %v1184, 0
        %1191 = vmatprep.subr.mxu0 0.0
        %1192 = vmatpush1.msra.mxu0 %v1171
        %1193 = vmatprep.subr.mxu0 0.0
        %1194 = vmatpush1.msra.mxu0 %v1172
        %1195 = vmatprep.subr.mxu0 0.0
        %1196 = vmatpush1.msra.mxu0 %v1173
        %1197 = vmatprep.subr.mxu0 0.0
        %1198 = vmatpush1.msra.mxu0 %v1174
        %1199 = vmatprep.subr.mxu0 0.0
        %1200 = vmatpush1.msra.mxu0 0.0
        %1201 = vmatprep.subr.mxu0 0.0
        %1202 = vmatpush1.msra.mxu0 0.0
        %1203 = vmatprep.subr.mxu0 0.0
        %1204 = vmatpush1.msra.mxu0 0.0
        %1205 = vmatprep.subr.mxu0 0.0
        %1206 = vmatpush1.msra.mxu0 0.0
        %1207 = vmatprep.subr.mxu0 0.0
        %1208 = vmatpush1.msra.mxu0 0.0
        %1209 = vmatprep.subr.mxu0 0.0
        %1210 = vmatpush1.msra.mxu0 0.0
        %1211 = vmatprep.subr.mxu0 0.0
        %1212 = vmatpush1.msra.mxu0 0.0
        %1213 = vmatprep.subr.mxu0 0.0
        %1214 = vmatpush1.msra.mxu0 0.0
        %1215 = vmatprep.subr.mxu0 0.0
        %1216 = vmatpush1.msra.mxu0 0.0
        %1217 = vmatprep.subr.mxu0 0.0
        %1218 = vmatpush1.msra.mxu0 0.0
        %1219 = vmatprep.subr.mxu0 0.0
        %1220 = vmatpush1.msra.mxu0 0.0
        %1221 = vmatprep.subr.mxu0 0.0
        %1222 = vmatpush1.msra.mxu0 0.0
        %1223 = vmatprep.subr.mxu0 0.0
        %1224 = vmatpush1.msra.mxu0 0.0
        %1225 = vmatprep.subr.mxu0 0.0
        %1226 = vmatpush1.msra.mxu0 0.0
        %1227 = vmatprep.subr.mxu0 0.0
        %1228 = vmatpush1.msra.mxu0 0.0
        %1229 = vmatprep.subr.mxu0 0.0
        %1230 = vmatpush1.msra.mxu0 0.0
        %1231 = vmatprep.subr.mxu0 0.0
        %1232 = vmatpush1.msra.mxu0 0.0
        %1233 = vmatprep.subr.mxu0 0.0
        %1234 = vmatpush1.msra.mxu0 0.0
        %1235 = vmatprep.subr.mxu0 0.0
        %1236 = vmatpush1.msra.mxu0 0.0
        %1237 = vmatprep.subr.mxu0 0.0
        %1238 = vmatpush1.msra.mxu0 0.0
        %1239 = vmatprep.subr.mxu0 0.0
        %1240 = vmatpush1.msra.mxu0 0.0
        %1241 = vmatprep.subr.mxu0 0.0
        %1242 = vmatpush1.msra.mxu0 0.0
        %1243 = vmatprep.subr.mxu0 0.0
        %1244 = vmatpush1.msra.mxu0 0.0
        %1245 = vmatprep.subr.mxu0 0.0
        %1246 = vmatpush1.msra.mxu0 0.0
        %1247 = vmatprep.subr.mxu0 0.0
        %1248 = vmatpush1.msra.mxu0 0.0
        %1249 = vmatprep.subr.mxu0 0.0
        %1250 = vmatpush1.msra.mxu0 0.0
        %1251 = vmatprep.subr.mxu0 0.0
        %1252 = vmatpush1.msra.mxu0 0.0
        %1253 = vmatprep.subr.mxu0 0.0
        %1254 = vmatpush1.msra.mxu0 0.0
        %1255 = vmatprep.mubr.f32.mxu0 0.0
        %1256 = vmatmul.mubr.f32.gmra.mrb[0].mxu0 %v1189
        %v1257 = vpop.f32.mrb[0].mxu0
        %v1258 = vadd.f32 0.0, %v1257
        %v1259 = vpop.f32.mrb[0].mxu0
        %1260 = vdwg.mxu0
        %1261 = vmatprep.subr.mxu0 0.0
        %1262 = vmatpush1.msra.mxu0 %v1175
        %1263 = vmatprep.subr.mxu0 0.0
        %1264 = vmatpush1.msra.mxu0 %v1176
        %1265 = vmatprep.subr.mxu0 0.0
        %1266 = vmatpush1.msra.mxu0 %v1177
        %1267 = vmatprep.subr.mxu0 0.0
        %1268 = vmatpush1.msra.mxu0 %v1178
        %1269 = vmatprep.subr.mxu0 0.0
        %1270 = vmatpush1.msra.mxu0 0.0
        %1271 = vmatprep.subr.mxu0 0.0
        %1272 = vmatpush1.msra.mxu0 0.0
        %1273 = vmatprep.subr.mxu0 0.0
        %1274 = vmatpush1.msra.mxu0 0.0
        %1275 = vmatprep.subr.mxu0 0.0
        %1276 = vmatpush1.msra.mxu0 0.0
        %1277 = vmatprep.subr.mxu0 0.0
        %1278 = vmatpush1.msra.mxu0 0.0
        %1279 = vmatprep.subr.mxu0 0.0
        %1280 = vmatpush1.msra.mxu0 0.0
        %1281 = vmatprep.subr.mxu0 0.0
        %1282 = vmatpush1.msra.mxu0 0.0
        %1283 = vmatprep.subr.mxu0 0.0
        %1284 = vmatpush1.msra.mxu0 0.0
        %1285 = vmatprep.subr.mxu0 0.0
        %1286 = vmatpush1.msra.mxu0 0.0
        %1287 = vmatprep.subr.mxu0 0.0
        %1288 = vmatpush1.msra.mxu0 0.0
        %1289 = vmatprep.subr.mxu0 0.0
        %1290 = vmatpush1.msra.mxu0 0.0
        %1291 = vmatprep.subr.mxu0 0.0
        %1292 = vmatpush1.msra.mxu0 0.0
        %1293 = vmatprep.subr.mxu0 0.0
        %1294 = vmatpush1.msra.mxu0 0.0
        %1295 = vmatprep.subr.mxu0 0.0
        %1296 = vmatpush1.msra.mxu0 0.0
        %1297 = vmatprep.subr.mxu0 0.0
        %1298 = vmatpush1.msra.mxu0 0.0
        %1299 = vmatprep.subr.mxu0 0.0
        %1300 = vmatpush1.msra.mxu0 0.0
        %1301 = vmatprep.subr.mxu0 0.0
        %1302 = vmatpush1.msra.mxu0 0.0
        %1303 = vmatprep.subr.mxu0 0.0
        %1304 = vmatpush1.msra.mxu0 0.0
        %1305 = vmatprep.subr.mxu0 0.0
        %1306 = vmatpush1.msra.mxu0 0.0
        %1307 = vmatprep.subr.mxu0 0.0
        %1308 = vmatpush1.msra.mxu0 0.0
        %1309 = vmatprep.subr.mxu0 0.0
        %1310 = vmatpush1.msra.mxu0 0.0
        %1311 = vmatprep.subr.mxu0 0.0
        %1312 = vmatpush1.msra.mxu0 0.0
        %1313 = vmatprep.subr.mxu0 0.0
        %1314 = vmatpush1.msra.mxu0 0.0
        %1315 = vmatprep.subr.mxu0 0.0
        %1316 = vmatpush1.msra.mxu0 0.0
        %1317 = vmatprep.subr.mxu0 0.0
        %1318 = vmatpush1.msra.mxu0 0.0
        %1319 = vmatprep.subr.mxu0 0.0
        %1320 = vmatpush1.msra.mxu0 0.0
        %1321 = vmatprep.subr.mxu0 0.0
        %1322 = vmatpush1.msra.mxu0 0.0
        %1323 = vmatprep.subr.mxu0 0.0
        %1324 = vmatpush1.msra.mxu0 0.0
        %1325 = vmatprep.mubr.f32.mxu0 0.0
        %1326 = vmatmul.mubr.f32.gmra.mrb[0].mxu0 %v1189
        %v1327 = vpop.f32.mrb[0].mxu0
        %v1328 = vadd.f32 0.0, %v1327
        %v1329 = vpop.f32.mrb[0].mxu0
        %1330 = vdwg.mxu0
        %v1332 = vlaneseq
        %v1333 = vshrl.u32 %v1332, 7
        %v1334 = vsub.s32 0, %v1333
        %v1335 = vrot.slane %v1183, %v1334
        %1337 = vmatprep.subr.mxu0 0.0
        %1338 = vmatpush1.msra.mxu0 %v1179
        %1339 = vmatprep.subr.mxu0 0.0
        %1340 = vmatpush1.msra.mxu0 %v1180
        %1341 = vmatprep.subr.mxu0 0.0
        %1342 = vmatpush1.msra.mxu0 %v1181
        %1343 = vmatprep.subr.mxu0 0.0
        %1344 = vmatpush1.msra.mxu0 %v1182
        %1345 = vmatprep.subr.mxu0 0.0
        %1346 = vmatpush1.msra.mxu0 0.0
        %1347 = vmatprep.subr.mxu0 0.0
        %1348 = vmatpush1.msra.mxu0 0.0
        %1349 = vmatprep.subr.mxu0 0.0
        %1350 = vmatpush1.msra.mxu0 0.0
        %1351 = vmatprep.subr.mxu0 0.0
        %1352 = vmatpush1.msra.mxu0 0.0
        %1353 = vmatprep.subr.mxu0 0.0
        %1354 = vmatpush1.msra.mxu0 0.0
        %1355 = vmatprep.subr.mxu0 0.0
        %1356 = vmatpush1.msra.mxu0 0.0
        %1357 = vmatprep.subr.mxu0 0.0
        %1358 = vmatpush1.msra.mxu0 0.0
        %1359 = vmatprep.subr.mxu0 0.0
        %1360 = vmatpush1.msra.mxu0 0.0
        %1361 = vmatprep.subr.mxu0 0.0
        %1362 = vmatpush1.msra.mxu0 0.0
        %1363 = vmatprep.subr.mxu0 0.0
        %1364 = vmatpush1.msra.mxu0 0.0
        %1365 = vmatprep.subr.mxu0 0.0
        %1366 = vmatpush1.msra.mxu0 0.0
        %1367 = vmatprep.subr.mxu0 0.0
        %1368 = vmatpush1.msra.mxu0 0.0
        %1369 = vmatprep.subr.mxu0 0.0
        %1370 = vmatpush1.msra.mxu0 0.0
        %1371 = vmatprep.subr.mxu0 0.0
        %1372 = vmatpush1.msra.mxu0 0.0
        %1373 = vmatprep.subr.mxu0 0.0
        %1374 = vmatpush1.msra.mxu0 0.0
        %1375 = vmatprep.subr.mxu0 0.0
        %1376 = vmatpush1.msra.mxu0 0.0
        %1377 = vmatprep.subr.mxu0 0.0
        %1378 = vmatpush1.msra.mxu0 0.0
        %1379 = vmatprep.subr.mxu0 0.0
        %1380 = vmatpush1.msra.mxu0 0.0
        %1381 = vmatprep.subr.mxu0 0.0
        %1382 = vmatpush1.msra.mxu0 0.0
        %1383 = vmatprep.subr.mxu0 0.0
        %1384 = vmatpush1.msra.mxu0 0.0
        %1385 = vmatprep.subr.mxu0 0.0
        %1386 = vmatpush1.msra.mxu0 0.0
        %1387 = vmatprep.subr.mxu0 0.0
        %1388 = vmatpush1.msra.mxu0 0.0
        %1389 = vmatprep.subr.mxu0 0.0
        %1390 = vmatpush1.msra.mxu0 0.0
        %1391 = vmatprep.subr.mxu0 0.0
        %1392 = vmatpush1.msra.mxu0 0.0
        %1393 = vmatprep.subr.mxu0 0.0
        %1394 = vmatpush1.msra.mxu0 0.0
        %1395 = vmatprep.subr.mxu0 0.0
        %1396 = vmatpush1.msra.mxu0 0.0
        %1397 = vmatprep.subr.mxu0 0.0
        %1398 = vmatpush1.msra.mxu0 0.0
        %1399 = vmatprep.subr.mxu0 0.0
        %1400 = vmatpush1.msra.mxu0 0.0
        %1401 = vmatprep.mubr.f32.mxu0 0.0
        %1402 = vmatmul.mubr.f32.gmra.mrb[0].mxu0 %v1189
        %v1403 = vpop.f32.mrb[0].mxu0
        %v1404 = vadd.f32 %v1335, %v1403
        %v1405 = vpop.f32.mrb[0].mxu0
        %1406 = vdwg.mxu0
        %v1407 = vadd.f32 %v1185, %v1258
        %v1408 = vxor.u32 %v1407, 2147483648
        %v1409 = vmul.f32 %v1408, 1.442695
        %v1410 = vpow.pop %v1409
        %v1411 = vadd.f32 %v1410, 1.0
        %v1412 = vrcp.pop %v1411
        %v1413 = vmul.f32 1.0, %v1412
        %v1414 = vadd.f32 %v1186, %v1328
        %v1415 = vxor.u32 %v1414, 2147483648
        %v1416 = vmul.f32 %v1415, 1.442695
        %v1417 = vpow.pop %v1416
        %v1418 = vadd.f32 %v1417, 1.0
        %v1419 = vrcp.pop %v1418
        %v1420 = vmul.f32 1.0, %v1419
        %v1421 = vmul.f32 %v1413, %v1404
        %v1422 = vadd.f32 %v1187, %v1421
        %v1423 = vtanh.pop %v1422
        %v1424 = vsub.f32 1.0, %v1420
        %v1425 = vmul.f32 %v1424, %v1423
        %v1426 = vmul.f32 %v1420, %v1184
        %v1427 = vadd.f32 %v1425, %v1426
        %vm1428 = vcmask 254976
        %1429 = vst.msk [vmem:[#allocation6] sm:$0x3] %vm1428, %v1427
        %v1430 = vld [vmem:[#allocation3 + $0x2] sm:$0x3]
        %v1431 = vld [vmem:[#allocation4 + $0x2] sm:$0x3]
        %v1432 = vld [vmem:[#allocation5 + $0x2] sm:$0x3]
        %v1434 = vsel %vm767, %v1427, 0
        %1436 = vmatprep.subr.mxu0 0.0
        %1437 = vmatpush1.msra.mxu0 %v1171
        %1438 = vmatprep.subr.mxu0 0.0
        %1439 = vmatpush1.msra.mxu0 %v1172
        %1440 = vmatprep.subr.mxu0 0.0
        %1441 = vmatpush1.msra.mxu0 %v1173
        %1442 = vmatprep.subr.mxu0 0.0
        %1443 = vmatpush1.msra.mxu0 %v1174
        %1444 = vmatprep.subr.mxu0 0.0
        %1445 = vmatpush1.msra.mxu0 0.0
        %1446 = vmatprep.subr.mxu0 0.0
        %1447 = vmatpush1.msra.mxu0 0.0
        %1448 = vmatprep.subr.mxu0 0.0
        %1449 = vmatpush1.msra.mxu0 0.0
        %1450 = vmatprep.subr.mxu0 0.0
        %1451 = vmatpush1.msra.mxu0 0.0
        %1452 = vmatprep.subr.mxu0 0.0
        %1453 = vmatpush1.msra.mxu0 0.0
        %1454 = vmatprep.subr.mxu0 0.0
        %1455 = vmatpush1.msra.mxu0 0.0
        %1456 = vmatprep.subr.mxu0 0.0
        %1457 = vmatpush1.msra.mxu0 0.0
        %1458 = vmatprep.subr.mxu0 0.0
        %1459 = vmatpush1.msra.mxu0 0.0
        %1460 = vmatprep.subr.mxu0 0.0
        %1461 = vmatpush1.msra.mxu0 0.0
        %1462 = vmatprep.subr.mxu0 0.0
        %1463 = vmatpush1.msra.mxu0 0.0
        %1464 = vmatprep.subr.mxu0 0.0
        %1465 = vmatpush1.msra.mxu0 0.0
        %1466 = vmatprep.subr.mxu0 0.0
        %1467 = vmatpush1.msra.mxu0 0.0
        %1468 = vmatprep.subr.mxu0 0.0
        %1469 = vmatpush1.msra.mxu0 0.0
        %1470 = vmatprep.subr.mxu0 0.0
        %1471 = vmatpush1.msra.mxu0 0.0
        %1472 = vmatprep.subr.mxu0 0.0
        %1473 = vmatpush1.msra.mxu0 0.0
        %1474 = vmatprep.subr.mxu0 0.0
        %1475 = vmatpush1.msra.mxu0 0.0
        %1476 = vmatprep.subr.mxu0 0.0
        %1477 = vmatpush1.msra.mxu0 0.0
        %1478 = vmatprep.subr.mxu0 0.0
        %1479 = vmatpush1.msra.mxu0 0.0
        %1480 = vmatprep.subr.mxu0 0.0
        %1481 = vmatpush1.msra.mxu0 0.0
        %1482 = vmatprep.subr.mxu0 0.0
        %1483 = vmatpush1.msra.mxu0 0.0
        %1484 = vmatprep.subr.mxu0 0.0
        %1485 = vmatpush1.msra.mxu0 0.0
        %1486 = vmatprep.subr.mxu0 0.0
        %1487 = vmatpush1.msra.mxu0 0.0
        %1488 = vmatprep.subr.mxu0 0.0
        %1489 = vmatpush1.msra.mxu0 0.0
        %1490 = vmatprep.subr.mxu0 0.0
        %1491 = vmatpush1.msra.mxu0 0.0
        %1492 = vmatprep.subr.mxu0 0.0
        %1493 = vmatpush1.msra.mxu0 0.0
        %1494 = vmatprep.subr.mxu0 0.0
        %1495 = vmatpush1.msra.mxu0 0.0
        %1496 = vmatprep.subr.mxu0 0.0
        %1497 = vmatpush1.msra.mxu0 0.0
        %1498 = vmatprep.subr.mxu0 0.0
        %1499 = vmatpush1.msra.mxu0 0.0
        %1500 = vmatprep.mubr.f32.mxu0 0.0
        %1501 = vmatmul.mubr.f32.gmra.mrb[0].mxu0 %v1434
        %v1502 = vpop.f32.mrb[0].mxu0
        %v1503 = vadd.f32 0.0, %v1502
        %v1504 = vpop.f32.mrb[0].mxu0
        %1505 = vdwg.mxu0
        %1506 = vmatprep.subr.mxu0 0.0
        %1507 = vmatpush1.msra.mxu0 %v1175
        %1508 = vmatprep.subr.mxu0 0.0
        %1509 = vmatpush1.msra.mxu0 %v1176
        %1510 = vmatprep.subr.mxu0 0.0
        %1511 = vmatpush1.msra.mxu0 %v1177
        %1512 = vmatprep.subr.mxu0 0.0
        %1513 = vmatpush1.msra.mxu0 %v1178
        %1514 = vmatprep.subr.mxu0 0.0
        %1515 = vmatpush1.msra.mxu0 0.0
        %1516 = vmatprep.subr.mxu0 0.0
        %1517 = vmatpush1.msra.mxu0 0.0
        %1518 = vmatprep.subr.mxu0 0.0
        %1519 = vmatpush1.msra.mxu0 0.0
        %1520 = vmatprep.subr.mxu0 0.0
        %1521 = vmatpush1.msra.mxu0 0.0
        %1522 = vmatprep.subr.mxu0 0.0
        %1523 = vmatpush1.msra.mxu0 0.0
        %1524 = vmatprep.subr.mxu0 0.0
        %1525 = vmatpush1.msra.mxu0 0.0
        %1526 = vmatprep.subr.mxu0 0.0
        %1527 = vmatpush1.msra.mxu0 0.0
        %1528 = vmatprep.subr.mxu0 0.0
        %1529 = vmatpush1.msra.mxu0 0.0
        %1530 = vmatprep.subr.mxu0 0.0
        %1531 = vmatpush1.msra.mxu0 0.0
        %1532 = vmatprep.subr.mxu0 0.0
        %1533 = vmatpush1.msra.mxu0 0.0
        %1534 = vmatprep.subr.mxu0 0.0
        %1535 = vmatpush1.msra.mxu0 0.0
        %1536 = vmatprep.subr.mxu0 0.0
        %1537 = vmatpush1.msra.mxu0 0.0
        %1538 = vmatprep.subr.mxu0 0.0
        %1539 = vmatpush1.msra.mxu0 0.0
        %1540 = vmatprep.subr.mxu0 0.0
        %1541 = vmatpush1.msra.mxu0 0.0
        %1542 = vmatprep.subr.mxu0 0.0
        %1543 = vmatpush1.msra.mxu0 0.0
        %1544 = vmatprep.subr.mxu0 0.0
        %1545 = vmatpush1.msra.mxu0 0.0
        %1546 = vmatprep.subr.mxu0 0.0
        %1547 = vmatpush1.msra.mxu0 0.0
        %1548 = vmatprep.subr.mxu0 0.0
        %1549 = vmatpush1.msra.mxu0 0.0
        %1550 = vmatprep.subr.mxu0 0.0
        %1551 = vmatpush1.msra.mxu0 0.0
        %1552 = vmatprep.subr.mxu0 0.0
        %1553 = vmatpush1.msra.mxu0 0.0
        %1554 = vmatprep.subr.mxu0 0.0
        %1555 = vmatpush1.msra.mxu0 0.0
        %1556 = vmatprep.subr.mxu0 0.0
        %1557 = vmatpush1.msra.mxu0 0.0
        %1558 = vmatprep.subr.mxu0 0.0
        %1559 = vmatpush1.msra.mxu0 0.0
        %1560 = vmatprep.subr.mxu0 0.0
        %1561 = vmatpush1.msra.mxu0 0.0
        %1562 = vmatprep.subr.mxu0 0.0
        %1563 = vmatpush1.msra.mxu0 0.0
        %1564 = vmatprep.subr.mxu0 0.0
        %1565 = vmatpush1.msra.mxu0 0.0
        %1566 = vmatprep.subr.mxu0 0.0
        %1567 = vmatpush1.msra.mxu0 0.0
        %1568 = vmatprep.subr.mxu0 0.0
        %1569 = vmatpush1.msra.mxu0 0.0
        %1570 = vmatprep.mubr.f32.mxu0 0.0
        %1571 = vmatmul.mubr.f32.gmra.mrb[0].mxu0 %v1434
        %v1572 = vpop.f32.mrb[0].mxu0
        %v1573 = vadd.f32 0.0, %v1572
        %v1574 = vpop.f32.mrb[0].mxu0
        %1575 = vdwg.mxu0
        %1576 = vmatprep.subr.mxu0 0.0
        %1577 = vmatpush1.msra.mxu0 %v1179
        %1578 = vmatprep.subr.mxu0 0.0
        %1579 = vmatpush1.msra.mxu0 %v1180
        %1580 = vmatprep.subr.mxu0 0.0
        %1581 = vmatpush1.msra.mxu0 %v1181
        %1582 = vmatprep.subr.mxu0 0.0
        %1583 = vmatpush1.msra.mxu0 %v1182
        %1584 = vmatprep.subr.mxu0 0.0
        %1585 = vmatpush1.msra.mxu0 0.0
        %1586 = vmatprep.subr.mxu0 0.0
        %1587 = vmatpush1.msra.mxu0 0.0
        %1588 = vmatprep.subr.mxu0 0.0
        %1589 = vmatpush1.msra.mxu0 0.0
        %1590 = vmatprep.subr.mxu0 0.0
        %1591 = vmatpush1.msra.mxu0 0.0
        %1592 = vmatprep.subr.mxu0 0.0
        %1593 = vmatpush1.msra.mxu0 0.0
        %1594 = vmatprep.subr.mxu0 0.0
        %1595 = vmatpush1.msra.mxu0 0.0
        %1596 = vmatprep.subr.mxu0 0.0
        %1597 = vmatpush1.msra.mxu0 0.0
        %1598 = vmatprep.subr.mxu0 0.0
        %1599 = vmatpush1.msra.mxu0 0.0
        %1600 = vmatprep.subr.mxu0 0.0
        %1601 = vmatpush1.msra.mxu0 0.0
        %1602 = vmatprep.subr.mxu0 0.0
        %1603 = vmatpush1.msra.mxu0 0.0
        %1604 = vmatprep.subr.mxu0 0.0
        %1605 = vmatpush1.msra.mxu0 0.0
        %1606 = vmatprep.subr.mxu0 0.0
        %1607 = vmatpush1.msra.mxu0 0.0
        %1608 = vmatprep.subr.mxu0 0.0
        %1609 = vmatpush1.msra.mxu0 0.0
        %1610 = vmatprep.subr.mxu0 0.0
        %1611 = vmatpush1.msra.mxu0 0.0
        %1612 = vmatprep.subr.mxu0 0.0
        %1613 = vmatpush1.msra.mxu0 0.0
        %1614 = vmatprep.subr.mxu0 0.0
        %1615 = vmatpush1.msra.mxu0 0.0
        %1616 = vmatprep.subr.mxu0 0.0
        %1617 = vmatpush1.msra.mxu0 0.0
        %1618 = vmatprep.subr.mxu0 0.0
        %1619 = vmatpush1.msra.mxu0 0.0
        %1620 = vmatprep.subr.mxu0 0.0
        %1621 = vmatpush1.msra.mxu0 0.0
        %1622 = vmatprep.subr.mxu0 0.0
        %1623 = vmatpush1.msra.mxu0 0.0
        %1624 = vmatprep.subr.mxu0 0.0
        %1625 = vmatpush1.msra.mxu0 0.0
        %1626 = vmatprep.subr.mxu0 0.0
        %1627 = vmatpush1.msra.mxu0 0.0
        %1628 = vmatprep.subr.mxu0 0.0
        %1629 = vmatpush1.msra.mxu0 0.0
        %1630 = vmatprep.subr.mxu0 0.0
        %1631 = vmatpush1.msra.mxu0 0.0
        %1632 = vmatprep.subr.mxu0 0.0
        %1633 = vmatpush1.msra.mxu0 0.0
        %1634 = vmatprep.subr.mxu0 0.0
        %1635 = vmatpush1.msra.mxu0 0.0
        %1636 = vmatprep.subr.mxu0 0.0
        %1637 = vmatpush1.msra.mxu0 0.0
        %1638 = vmatprep.subr.mxu0 0.0
        %1639 = vmatpush1.msra.mxu0 0.0
        %1640 = vmatprep.mubr.f32.mxu0 0.0
        %1641 = vmatmul.mubr.f32.gmra.mrb[0].mxu0 %v1434
        %v1642 = vpop.f32.mrb[0].mxu0
        %v1643 = vadd.f32 %v1335, %v1642
        %v1644 = vpop.f32.mrb[0].mxu0
        %1645 = vdwg.mxu0
        %v1646 = vadd.f32 %v1430, %v1503
        %v1647 = vxor.u32 %v1646, 2147483648
        %v1648 = vmul.f32 %v1647, 1.442695
        %v1649 = vpow.pop %v1648
        %v1650 = vadd.f32 %v1649, 1.0
        %v1651 = vrcp.pop %v1650
        %v1652 = vmul.f32 1.0, %v1651
        %v1653 = vadd.f32 %v1431, %v1573
        %v1654 = vxor.u32 %v1653, 2147483648
        %v1655 = vmul.f32 %v1654, 1.442695
        %v1656 = vpow.pop %v1655
        %v1657 = vadd.f32 %v1656, 1.0
        %v1658 = vrcp.pop %v1657
        %v1659 = vmul.f32 1.0, %v1658
        %v1660 = vmul.f32 %v1652, %v1643
        %v1661 = vadd.f32 %v1432, %v1660
        %v1662 = vtanh.pop %v1661
        %v1663 = vsub.f32 1.0, %v1659
        %v1664 = vmul.f32 %v1663, %v1662
        %v1665 = vmul.f32 %v1659, %v1427
        %v1666 = vadd.f32 %v1664, %v1665
        %1667 = vst.msk [vmem:[#allocation6 + $0x2] sm:$0x3] %vm1428, %v1666
        %v1668 = vld [vmem:[#allocation3 + $0x4] sm:$0x3]
        %v1669 = vld [vmem:[#allocation4 + $0x4] sm:$0x3]
        %v1670 = vld [vmem:[#allocation5 + $0x4] sm:$0x3]
        %v1672 = vsel %vm767, %v1666, 0
        %1674 = vmatprep.subr.mxu0 0.0
        %1675 = vmatpush1.msra.mxu0 %v1171
        %1676 = vmatprep.subr.mxu0 0.0
        %1677 = vmatpush1.msra.mxu0 %v1172
        %1678 = vmatprep.subr.mxu0 0.0
        %1679 = vmatpush1.msra.mxu0 %v1173
        %1680 = vmatprep.subr.mxu0 0.0
        %1681 = vmatpush1.msra.mxu0 %v1174
        %1682 = vmatprep.subr.mxu0 0.0
        %1683 = vmatpush1.msra.mxu0 0.0
        %1684 = vmatprep.subr.mxu0 0.0
        %1685 = vmatpush1.msra.mxu0 0.0
        %1686 = vmatprep.subr.mxu0 0.0
        %1687 = vmatpush1.msra.mxu0 0.0
        %1688 = vmatprep.subr.mxu0 0.0
        %1689 = vmatpush1.msra.mxu0 0.0
        %1690 = vmatprep.subr.mxu0 0.0
        %1691 = vmatpush1.msra.mxu0 0.0
        %1692 = vmatprep.subr.mxu0 0.0
        %1693 = vmatpush1.msra.mxu0 0.0
        %1694 = vmatprep.subr.mxu0 0.0
        %1695 = vmatpush1.msra.mxu0 0.0
        %1696 = vmatprep.subr.mxu0 0.0
        %1697 = vmatpush1.msra.mxu0 0.0
        %1698 = vmatprep.subr.mxu0 0.0
        %1699 = vmatpush1.msra.mxu0 0.0
        %1700 = vmatprep.subr.mxu0 0.0
        %1701 = vmatpush1.msra.mxu0 0.0
        %1702 = vmatprep.subr.mxu0 0.0
        %1703 = vmatpush1.msra.mxu0 0.0
        %1704 = vmatprep.subr.mxu0 0.0
        %1705 = vmatpush1.msra.mxu0 0.0
        %1706 = vmatprep.subr.mxu0 0.0
        %1707 = vmatpush1.msra.mxu0 0.0
        %1708 = vmatprep.subr.mxu0 0.0
        %1709 = vmatpush1.msra.mxu0 0.0
        %1710 = vmatprep.subr.mxu0 0.0
        %1711 = vmatpush1.msra.mxu0 0.0
        %1712 = vmatprep.subr.mxu0 0.0
        %1713 = vmatpush1.msra.mxu0 0.0
        %1714 = vmatprep.subr.mxu0 0.0
        %1715 = vmatpush1.msra.mxu0 0.0
        %1716 = vmatprep.subr.mxu0 0.0
        %1717 = vmatpush1.msra.mxu0 0.0
        %1718 = vmatprep.subr.mxu0 0.0
        %1719 = vmatpush1.msra.mxu0 0.0
        %1720 = vmatprep.subr.mxu0 0.0
        %1721 = vmatpush1.msra.mxu0 0.0
        %1722 = vmatprep.subr.mxu0 0.0
        %1723 = vmatpush1.msra.mxu0 0.0
        %1724 = vmatprep.subr.mxu0 0.0
        %1725 = vmatpush1.msra.mxu0 0.0
        %1726 = vmatprep.subr.mxu0 0.0
        %1727 = vmatpush1.msra.mxu0 0.0
        %1728 = vmatprep.subr.mxu0 0.0
        %1729 = vmatpush1.msra.mxu0 0.0
        %1730 = vmatprep.subr.mxu0 0.0
        %1731 = vmatpush1.msra.mxu0 0.0
        %1732 = vmatprep.subr.mxu0 0.0
        %1733 = vmatpush1.msra.mxu0 0.0
        %1734 = vmatprep.subr.mxu0 0.0
        %1735 = vmatpush1.msra.mxu0 0.0
        %1736 = vmatprep.subr.mxu0 0.0
        %1737 = vmatpush1.msra.mxu0 0.0
        %1738 = vmatprep.mubr.f32.mxu0 0.0
        %1739 = vmatmul.mubr.f32.gmra.mrb[0].mxu0 %v1672
        %v1740 = vpop.f32.mrb[0].mxu0
        %v1741 = vadd.f32 0.0, %v1740
        %v1742 = vpop.f32.mrb[0].mxu0
        %1743 = vdwg.mxu0
        %1744 = vmatprep.subr.mxu0 0.0
        %1745 = vmatpush1.msra.mxu0 %v1175
        %1746 = vmatprep.subr.mxu0 0.0
        %1747 = vmatpush1.msra.mxu0 %v1176
        %1748 = vmatprep.subr.mxu0 0.0
        %1749 = vmatpush1.msra.mxu0 %v1177
        %1750 = vmatprep.subr.mxu0 0.0
        %1751 = vmatpush1.msra.mxu0 %v1178
        %1752 = vmatprep.subr.mxu0 0.0
        %1753 = vmatpush1.msra.mxu0 0.0
        %1754 = vmatprep.subr.mxu0 0.0
        %1755 = vmatpush1.msra.mxu0 0.0
        %1756 = vmatprep.subr.mxu0 0.0
        %1757 = vmatpush1.msra.mxu0 0.0
        %1758 = vmatprep.subr.mxu0 0.0
        %1759 = vmatpush1.msra.mxu0 0.0
        %1760 = vmatprep.subr.mxu0 0.0
        %1761 = vmatpush1.msra.mxu0 0.0
        %1762 = vmatprep.subr.mxu0 0.0
        %1763 = vmatpush1.msra.mxu0 0.0
        %1764 = vmatprep.subr.mxu0 0.0
        %1765 = vmatpush1.msra.mxu0 0.0
        %1766 = vmatprep.subr.mxu0 0.0
        %1767 = vmatpush1.msra.mxu0 0.0
        %1768 = vmatprep.subr.mxu0 0.0
        %1769 = vmatpush1.msra.mxu0 0.0
        %1770 = vmatprep.subr.mxu0 0.0
        %1771 = vmatpush1.msra.mxu0 0.0
        %1772 = vmatprep.subr.mxu0 0.0
        %1773 = vmatpush1.msra.mxu0 0.0
        %1774 = vmatprep.subr.mxu0 0.0
        %1775 = vmatpush1.msra.mxu0 0.0
        %1776 = vmatprep.subr.mxu0 0.0
        %1777 = vmatpush1.msra.mxu0 0.0
        %1778 = vmatprep.subr.mxu0 0.0
        %1779 = vmatpush1.msra.mxu0 0.0
        %1780 = vmatprep.subr.mxu0 0.0
        %1781 = vmatpush1.msra.mxu0 0.0
        %1782 = vmatprep.subr.mxu0 0.0
        %1783 = vmatpush1.msra.mxu0 0.0
        %1784 = vmatprep.subr.mxu0 0.0
        %1785 = vmatpush1.msra.mxu0 0.0
        %1786 = vmatprep.subr.mxu0 0.0
        %1787 = vmatpush1.msra.mxu0 0.0
        %1788 = vmatprep.subr.mxu0 0.0
        %1789 = vmatpush1.msra.mxu0 0.0
        %1790 = vmatprep.subr.mxu0 0.0
        %1791 = vmatpush1.msra.mxu0 0.0
        %1792 = vmatprep.subr.mxu0 0.0
        %1793 = vmatpush1.msra.mxu0 0.0
        %1794 = vmatprep.subr.mxu0 0.0
        %1795 = vmatpush1.msra.mxu0 0.0
        %1796 = vmatprep.subr.mxu0 0.0
        %1797 = vmatpush1.msra.mxu0 0.0
        %1798 = vmatprep.subr.mxu0 0.0
        %1799 = vmatpush1.msra.mxu0 0.0
        %1800 = vmatprep.subr.mxu0 0.0
        %1801 = vmatpush1.msra.mxu0 0.0
        %1802 = vmatprep.subr.mxu0 0.0
        %1803 = vmatpush1.msra.mxu0 0.0
        %1804 = vmatprep.subr.mxu0 0.0
        %1805 = vmatpush1.msra.mxu0 0.0
        %1806 = vmatprep.subr.mxu0 0.0
        %1807 = vmatpush1.msra.mxu0 0.0
        %1808 = vmatprep.mubr.f32.mxu0 0.0
        %1809 = vmatmul.mubr.f32.gmra.mrb[0].mxu0 %v1672
        %v1810 = vpop.f32.mrb[0].mxu0
        %v1811 = vadd.f32 0.0, %v1810
        %v1812 = vpop.f32.mrb[0].mxu0
        %1813 = vdwg.mxu0
        %1814 = vmatprep.subr.mxu0 0.0
        %1815 = vmatpush1.msra.mxu0 %v1179
        %1816 = vmatprep.subr.mxu0 0.0
        %1817 = vmatpush1.msra.mxu0 %v1180
        %1818 = vmatprep.subr.mxu0 0.0
        %1819 = vmatpush1.msra.mxu0 %v1181
        %1820 = vmatprep.subr.mxu0 0.0
        %1821 = vmatpush1.msra.mxu0 %v1182
        %1822 = vmatprep.subr.mxu0 0.0
        %1823 = vmatpush1.msra.mxu0 0.0
        %1824 = vmatprep.subr.mxu0 0.0
        %1825 = vmatpush1.msra.mxu0 0.0
        %1826 = vmatprep.subr.mxu0 0.0
        %1827 = vmatpush1.msra.mxu0 0.0
        %1828 = vmatprep.subr.mxu0 0.0
        %1829 = vmatpush1.msra.mxu0 0.0
        %1830 = vmatprep.subr.mxu0 0.0
        %1831 = vmatpush1.msra.mxu0 0.0
        %1832 = vmatprep.subr.mxu0 0.0
        %1833 = vmatpush1.msra.mxu0 0.0
        %1834 = vmatprep.subr.mxu0 0.0
        %1835 = vmatpush1.msra.mxu0 0.0
        %1836 = vmatprep.subr.mxu0 0.0
        %1837 = vmatpush1.msra.mxu0 0.0
        %1838 = vmatprep.subr.mxu0 0.0
        %1839 = vmatpush1.msra.mxu0 0.0
        %1840 = vmatprep.subr.mxu0 0.0
        %1841 = vmatpush1.msra.mxu0 0.0
        %1842 = vmatprep.subr.mxu0 0.0
        %1843 = vmatpush1.msra.mxu0 0.0
        %1844 = vmatprep.subr.mxu0 0.0
        %1845 = vmatpush1.msra.mxu0 0.0
        %1846 = vmatprep.subr.mxu0 0.0
        %1847 = vmatpush1.msra.mxu0 0.0
        %1848 = vmatprep.subr.mxu0 0.0
        %1849 = vmatpush1.msra.mxu0 0.0
        %1850 = vmatprep.subr.mxu0 0.0
        %1851 = vmatpush1.msra.mxu0 0.0
        %1852 = vmatprep.subr.mxu0 0.0
        %1853 = vmatpush1.msra.mxu0 0.0
        %1854 = vmatprep.subr.mxu0 0.0
        %1855 = vmatpush1.msra.mxu0 0.0
        %1856 = vmatprep.subr.mxu0 0.0
        %1857 = vmatpush1.msra.mxu0 0.0
        %1858 = vmatprep.subr.mxu0 0.0
        %1859 = vmatpush1.msra.mxu0 0.0
        %1860 = vmatprep.subr.mxu0 0.0
        %1861 = vmatpush1.msra.mxu0 0.0
        %1862 = vmatprep.subr.mxu0 0.0
        %1863 = vmatpush1.msra.mxu0 0.0
        %1864 = vmatprep.subr.mxu0 0.0
        %1865 = vmatpush1.msra.mxu0 0.0
        %1866 = vmatprep.subr.mxu0 0.0
        %1867 = vmatpush1.msra.mxu0 0.0
        %1868 = vmatprep.subr.mxu0 0.0
        %1869 = vmatpush1.msra.mxu0 0.0
        %1870 = vmatprep.subr.mxu0 0.0
        %1871 = vmatpush1.msra.mxu0 0.0
        %1872 = vmatprep.subr.mxu0 0.0
        %1873 = vmatpush1.msra.mxu0 0.0
        %1874 = vmatprep.subr.mxu0 0.0
        %1875 = vmatpush1.msra.mxu0 0.0
        %1876 = vmatprep.subr.mxu0 0.0
        %1877 = vmatpush1.msra.mxu0 0.0
        %1878 = vmatprep.mubr.f32.mxu0 0.0
        %1879 = vmatmul.mubr.f32.gmra.mrb[0].mxu0 %v1672
        %v1880 = vpop.f32.mrb[0].mxu0
        %v1881 = vadd.f32 %v1335, %v1880
        %v1882 = vpop.f32.mrb[0].mxu0
        %1883 = vdwg.mxu0
        %v1884 = vadd.f32 %v1668, %v1741
        %v1885 = vxor.u32 %v1884, 2147483648
        %v1886 = vmul.f32 %v1885, 1.442695
        %v1887 = vpow.pop %v1886
        %v1888 = vadd.f32 %v1887, 1.0
        %v1889 = vrcp.pop %v1888
        %v1890 = vmul.f32 1.0, %v1889
        %v1891 = vadd.f32 %v1669, %v1811
        %v1892 = vxor.u32 %v1891, 2147483648
        %v1893 = vmul.f32 %v1892, 1.442695
        %v1894 = vpow.pop %v1893
        %v1895 = vadd.f32 %v1894, 1.0
        %v1896 = vrcp.pop %v1895
        %v1897 = vmul.f32 1.0, %v1896
        %v1898 = vmul.f32 %v1890, %v1881
        %v1899 = vadd.f32 %v1670, %v1898
        %v1900 = vtanh.pop %v1899
        %v1901 = vsub.f32 1.0, %v1897
        %v1902 = vmul.f32 %v1901, %v1900
        %v1903 = vmul.f32 %v1897, %v1666
        %v1904 = vadd.f32 %v1902, %v1903
        %1905 = vst.msk [vmem:[#allocation6 + $0x4] sm:$0x3] %vm1428, %v1904
        %v1906 = vld [vmem:[#allocation3 + $0x6] sm:$0x3]
        %v1907 = vld [vmem:[#allocation4 + $0x6] sm:$0x3]
        %v1908 = vld [vmem:[#allocation5 + $0x6] sm:$0x3]
        %v1910 = vsel %vm767, %v1904, 0
        %1912 = vmatprep.subr.mxu0 0.0
        %1913 = vmatpush1.msra.mxu0 %v1171
        %1914 = vmatprep.subr.mxu0 0.0
        %1915 = vmatpush1.msra.mxu0 %v1172
        %1916 = vmatprep.subr.mxu0 0.0
        %1917 = vmatpush1.msra.mxu0 %v1173
        %1918 = vmatprep.subr.mxu0 0.0
        %1919 = vmatpush1.msra.mxu0 %v1174
        %1920 = vmatprep.subr.mxu0 0.0
        %1921 = vmatpush1.msra.mxu0 0.0
        %1922 = vmatprep.subr.mxu0 0.0
        %1923 = vmatpush1.msra.mxu0 0.0
        %1924 = vmatprep.subr.mxu0 0.0
        %1925 = vmatpush1.msra.mxu0 0.0
        %1926 = vmatprep.subr.mxu0 0.0
        %1927 = vmatpush1.msra.mxu0 0.0
        %1928 = vmatprep.subr.mxu0 0.0
        %1929 = vmatpush1.msra.mxu0 0.0
        %1930 = vmatprep.subr.mxu0 0.0
        %1931 = vmatpush1.msra.mxu0 0.0
        %1932 = vmatprep.subr.mxu0 0.0
        %1933 = vmatpush1.msra.mxu0 0.0
        %1934 = vmatprep.subr.mxu0 0.0
        %1935 = vmatpush1.msra.mxu0 0.0
        %1936 = vmatprep.subr.mxu0 0.0
        %1937 = vmatpush1.msra.mxu0 0.0
        %1938 = vmatprep.subr.mxu0 0.0
        %1939 = vmatpush1.msra.mxu0 0.0
        %1940 = vmatprep.subr.mxu0 0.0
        %1941 = vmatpush1.msra.mxu0 0.0
        %1942 = vmatprep.subr.mxu0 0.0
        %1943 = vmatpush1.msra.mxu0 0.0
        %1944 = vmatprep.subr.mxu0 0.0
        %1945 = vmatpush1.msra.mxu0 0.0
        %1946 = vmatprep.subr.mxu0 0.0
        %1947 = vmatpush1.msra.mxu0 0.0
        %1948 = vmatprep.subr.mxu0 0.0
        %1949 = vmatpush1.msra.mxu0 0.0
        %1950 = vmatprep.subr.mxu0 0.0
        %1951 = vmatpush1.msra.mxu0 0.0
        %1952 = vmatprep.subr.mxu0 0.0
        %1953 = vmatpush1.msra.mxu0 0.0
        %1954 = vmatprep.subr.mxu0 0.0
        %1955 = vmatpush1.msra.mxu0 0.0
        %1956 = vmatprep.subr.mxu0 0.0
        %1957 = vmatpush1.msra.mxu0 0.0
        %1958 = vmatprep.subr.mxu0 0.0
        %1959 = vmatpush1.msra.mxu0 0.0
        %1960 = vmatprep.subr.mxu0 0.0
        %1961 = vmatpush1.msra.mxu0 0.0
        %1962 = vmatprep.subr.mxu0 0.0
        %1963 = vmatpush1.msra.mxu0 0.0
        %1964 = vmatprep.subr.mxu0 0.0
        %1965 = vmatpush1.msra.mxu0 0.0
        %1966 = vmatprep.subr.mxu0 0.0
        %1967 = vmatpush1.msra.mxu0 0.0
        %1968 = vmatprep.subr.mxu0 0.0
        %1969 = vmatpush1.msra.mxu0 0.0
        %1970 = vmatprep.subr.mxu0 0.0
        %1971 = vmatpush1.msra.mxu0 0.0
        %1972 = vmatprep.subr.mxu0 0.0
        %1973 = vmatpush1.msra.mxu0 0.0
        %1974 = vmatprep.subr.mxu0 0.0
        %1975 = vmatpush1.msra.mxu0 0.0
        %1976 = vmatprep.mubr.f32.mxu0 0.0
        %1977 = vmatmul.mubr.f32.gmra.mrb[0].mxu0 %v1910
        %v1978 = vpop.f32.mrb[0].mxu0
        %v1979 = vadd.f32 0.0, %v1978
        %v1980 = vpop.f32.mrb[0].mxu0
        %1981 = vdwg.mxu0
        %1982 = vmatprep.subr.mxu0 0.0
        %1983 = vmatpush1.msra.mxu0 %v1175
        %1984 = vmatprep.subr.mxu0 0.0
        %1985 = vmatpush1.msra.mxu0 %v1176
        %1986 = vmatprep.subr.mxu0 0.0
        %1987 = vmatpush1.msra.mxu0 %v1177
        %1988 = vmatprep.subr.mxu0 0.0
        %1989 = vmatpush1.msra.mxu0 %v1178
        %1990 = vmatprep.subr.mxu0 0.0
        %1991 = vmatpush1.msra.mxu0 0.0
        %1992 = vmatprep.subr.mxu0 0.0
        %1993 = vmatpush1.msra.mxu0 0.0
        %1994 = vmatprep.subr.mxu0 0.0
        %1995 = vmatpush1.msra.mxu0 0.0
        %1996 = vmatprep.subr.mxu0 0.0
        %1997 = vmatpush1.msra.mxu0 0.0
        %1998 = vmatprep.subr.mxu0 0.0
        %1999 = vmatpush1.msra.mxu0 0.0
        %2000 = vmatprep.subr.mxu0 0.0
        %2001 = vmatpush1.msra.mxu0 0.0
        %2002 = vmatprep.subr.mxu0 0.0
        %2003 = vmatpush1.msra.mxu0 0.0
        %2004 = vmatprep.subr.mxu0 0.0
        %2005 = vmatpush1.msra.mxu0 0.0
        %2006 = vmatprep.subr.mxu0 0.0
        %2007 = vmatpush1.msra.mxu0 0.0
        %2008 = vmatprep.subr.mxu0 0.0
        %2009 = vmatpush1.msra.mxu0 0.0
        %2010 = vmatprep.subr.mxu0 0.0
        %2011 = vmatpush1.msra.mxu0 0.0
        %2012 = vmatprep.subr.mxu0 0.0
        %2013 = vmatpush1.msra.mxu0 0.0
        %2014 = vmatprep.subr.mxu0 0.0
        %2015 = vmatpush1.msra.mxu0 0.0
        %2016 = vmatprep.subr.mxu0 0.0
        %2017 = vmatpush1.msra.mxu0 0.0
        %2018 = vmatprep.subr.mxu0 0.0
        %2019 = vmatpush1.msra.mxu0 0.0
        %2020 = vmatprep.subr.mxu0 0.0
        %2021 = vmatpush1.msra.mxu0 0.0
        %2022 = vmatprep.subr.mxu0 0.0
        %2023 = vmatpush1.msra.mxu0 0.0
        %2024 = vmatprep.subr.mxu0 0.0
        %2025 = vmatpush1.msra.mxu0 0.0
        %2026 = vmatprep.subr.mxu0 0.0
        %2027 = vmatpush1.msra.mxu0 0.0
        %2028 = vmatprep.subr.mxu0 0.0
        %2029 = vmatpush1.msra.mxu0 0.0
        %2030 = vmatprep.subr.mxu0 0.0
        %2031 = vmatpush1.msra.mxu0 0.0
        %2032 = vmatprep.subr.mxu0 0.0
        %2033 = vmatpush1.msra.mxu0 0.0
        %2034 = vmatprep.subr.mxu0 0.0
        %2035 = vmatpush1.msra.mxu0 0.0
        %2036 = vmatprep.subr.mxu0 0.0
        %2037 = vmatpush1.msra.mxu0 0.0
        %2038 = vmatprep.subr.mxu0 0.0
        %2039 = vmatpush1.msra.mxu0 0.0
        %2040 = vmatprep.subr.mxu0 0.0
        %2041 = vmatpush1.msra.mxu0 0.0
        %2042 = vmatprep.subr.mxu0 0.0
        %2043 = vmatpush1.msra.mxu0 0.0
        %2044 = vmatprep.subr.mxu0 0.0
        %2045 = vmatpush1.msra.mxu0 0.0
        %2046 = vmatprep.mubr.f32.mxu0 0.0
        %2047 = vmatmul.mubr.f32.gmra.mrb[0].mxu0 %v1910
        %v2048 = vpop.f32.mrb[0].mxu0
        %v2049 = vadd.f32 0.0, %v2048
        %v2050 = vpop.f32.mrb[0].mxu0
        %2051 = vdwg.mxu0
        %2052 = vmatprep.subr.mxu0 0.0
        %2053 = vmatpush1.msra.mxu0 %v1179
        %2054 = vmatprep.subr.mxu0 0.0
        %2055 = vmatpush1.msra.mxu0 %v1180
        %2056 = vmatprep.subr.mxu0 0.0
        %2057 = vmatpush1.msra.mxu0 %v1181
        %2058 = vmatprep.subr.mxu0 0.0
        %2059 = vmatpush1.msra.mxu0 %v1182
        %2060 = vmatprep.subr.mxu0 0.0
        %2061 = vmatpush1.msra.mxu0 0.0
        %2062 = vmatprep.subr.mxu0 0.0
        %2063 = vmatpush1.msra.mxu0 0.0
        %2064 = vmatprep.subr.mxu0 0.0
        %2065 = vmatpush1.msra.mxu0 0.0
        %2066 = vmatprep.subr.mxu0 0.0
        %2067 = vmatpush1.msra.mxu0 0.0
        %2068 = vmatprep.subr.mxu0 0.0
        %2069 = vmatpush1.msra.mxu0 0.0
        %2070 = vmatprep.subr.mxu0 0.0
        %2071 = vmatpush1.msra.mxu0 0.0
        %2072 = vmatprep.subr.mxu0 0.0
        %2073 = vmatpush1.msra.mxu0 0.0
        %2074 = vmatprep.subr.mxu0 0.0
        %2075 = vmatpush1.msra.mxu0 0.0
        %2076 = vmatprep.subr.mxu0 0.0
        %2077 = vmatpush1.msra.mxu0 0.0
        %2078 = vmatprep.subr.mxu0 0.0
        %2079 = vmatpush1.msra.mxu0 0.0
        %2080 = vmatprep.subr.mxu0 0.0
        %2081 = vmatpush1.msra.mxu0 0.0
        %2082 = vmatprep.subr.mxu0 0.0
        %2083 = vmatpush1.msra.mxu0 0.0
        %2084 = vmatprep.subr.mxu0 0.0
        %2085 = vmatpush1.msra.mxu0 0.0
        %2086 = vmatprep.subr.mxu0 0.0
        %2087 = vmatpush1.msra.mxu0 0.0
        %2088 = vmatprep.subr.mxu0 0.0
        %2089 = vmatpush1.msra.mxu0 0.0
        %2090 = vmatprep.subr.mxu0 0.0
        %2091 = vmatpush1.msra.mxu0 0.0
        %2092 = vmatprep.subr.mxu0 0.0
        %2093 = vmatpush1.msra.mxu0 0.0
        %2094 = vmatprep.subr.mxu0 0.0
        %2095 = vmatpush1.msra.mxu0 0.0
        %2096 = vmatprep.subr.mxu0 0.0
        %2097 = vmatpush1.msra.mxu0 0.0
        %2098 = vmatprep.subr.mxu0 0.0
        %2099 = vmatpush1.msra.mxu0 0.0
        %2100 = vmatprep.subr.mxu0 0.0
        %2101 = vmatpush1.msra.mxu0 0.0
        %2102 = vmatprep.subr.mxu0 0.0
        %2103 = vmatpush1.msra.mxu0 0.0
        %2104 = vmatprep.subr.mxu0 0.0
        %2105 = vmatpush1.msra.mxu0 0.0
        %2106 = vmatprep.subr.mxu0 0.0
        %2107 = vmatpush1.msra.mxu0 0.0
        %2108 = vmatprep.subr.mxu0 0.0
        %2109 = vmatpush1.msra.mxu0 0.0
        %2110 = vmatprep.subr.mxu0 0.0
        %2111 = vmatpush1.msra.mxu0 0.0
        %2112 = vmatprep.subr.mxu0 0.0
        %2113 = vmatpush1.msra.mxu0 0.0
        %2114 = vmatprep.subr.mxu0 0.0
        %2115 = vmatpush1.msra.mxu0 0.0
        %2116 = vmatprep.mubr.f32.mxu0 0.0
        %2117 = vmatmul.mubr.f32.gmra.mrb[0].mxu0 %v1910
        %v2118 = vpop.f32.mrb[0].mxu0
        %v2119 = vadd.f32 %v1335, %v2118
        %v2120 = vpop.f32.mrb[0].mxu0
        %2121 = vdwg.mxu0
        %v2122 = vadd.f32 %v1906, %v1979
        %v2123 = vxor.u32 %v2122, 2147483648
        %v2124 = vmul.f32 %v2123, 1.442695
        %v2125 = vpow.pop %v2124
        %v2126 = vadd.f32 %v2125, 1.0
        %v2127 = vrcp.pop %v2126
        %v2128 = vmul.f32 1.0, %v2127
        %v2129 = vadd.f32 %v1907, %v2049
        %v2130 = vxor.u32 %v2129, 2147483648
        %v2131 = vmul.f32 %v2130, 1.442695
        %v2132 = vpow.pop %v2131
        %v2133 = vadd.f32 %v2132, 1.0
        %v2134 = vrcp.pop %v2133
        %v2135 = vmul.f32 1.0, %v2134
        %v2136 = vmul.f32 %v2128, %v2119
        %v2137 = vadd.f32 %v1908, %v2136
        %v2138 = vtanh.pop %v2137
        %v2139 = vsub.f32 1.0, %v2135
        %v2140 = vmul.f32 %v2139, %v2138
        %v2141 = vmul.f32 %v2135, %v1904
        %v2142 = vadd.f32 %v2140, %v2141
        %2143 = vst.msk [vmem:[#allocation6 + $0x6] sm:$0x3] %vm1428, %v2142
        %2144 = vst.msk [vmem:[#allocation2] sm:$0x3] %vm1428, %v2142
        %2145 = vst.msk [vmem:[#allocation24] sm:$0x3] %vm1428, %v2142
        %v2146 = vld [vmem:[#allocation6] sm:$0xff]
        %v2147 = vsel %vm767, %v2146, 0.0
        %2148 = vadd.xlane.f32.xlu0 %v2147
        %v2149 = vpop.xlane.xlu0 %2148
        %v2150 = vrcp.pop 32.0
        %v2151 = vmul.f32 %v2149, %v2150
        %v2152 = vsub.f32 %v2146, %v2151
        %v2153 = vmul.f32 %v2152, %v2152
        %v2154 = vsel %vm767, %v2153, 0.0
        %2155 = vadd.xlane.f32.xlu0 %v2154
        %v2156 = vpop.xlane.xlu0 %2155
        %v2157 = vmul.f32 %v2156, %v2150
        %v2158 = vadd.f32 %v2157, 1e-05
        %v2159 = vrsqrt.pop %v2158
        %v2160 = vmul.f32 %v2152, %v2159
        %v2161 = vld [vmem:[#allocation21] sm:$0x1]
        %v2163 = vlaneseq
        %v2164 = vshrl.u32 %v2163, 7
        %v2165 = vsub.s32 0, %v2164
        %v2166 = vrot.slane %v2161, %v2165
        %v2168 = vmul.f32 %v2160, %v2166
        %v2169 = vld [vmem:[#allocation22] sm:$0x1]
        %v2171 = vlaneseq
        %v2172 = vshrl.u32 %v2171, 7
        %v2173 = vsub.s32 0, %v2172
        %v2174 = vrot.slane %v2169, %v2173
        %v2176 = vadd.f32 %v2168, %v2174
        %v2177 = vld [vmem:[%s741] sm:$0xff]
        %v2178 = vadd.f32 %v2176, %v2177
        %2179 = vst.msk [vmem:[%s749] sm:$0xff] %vm767, %v2178
        %p2180 = scmp.lt.s32.totalorder %s38, 1
        %s2181 = scalar_select %p2180, %s38, 1
        %s2182 = smul.addr %s2181, 8
        %s2183 = scalar_lea.vmem %s18, %s2182
        // Predicated region
        $region137: #{rnmt_plus_decoder_layer.1} parent=91 // pred_check
          %p2184 = pneg %p444
        $region138: #{rnmt_plus_decoder_layer.1} parent=91 // pred_check_branch
          %2186 = sbr.rel (%p2184) target = $region140
        $region139: #{rnmt_plus_decoder_layer.1} parent=91 // pred_region
          _
        $region140: #{rnmt_plus_decoder_layer.1} parent=91 // pred_fallthru
          _
        // Predicated region
        $region141: #{rnmt_plus_decoder_layer.1} parent=91 // pred_check
          %p2187 = pneg %p465
        $region142: #{rnmt_plus_decoder_layer.1} parent=91 // pred_check_branch
          %2189 = sbr.rel (%p2187) target = $region144
        $region143: #{rnmt_plus_decoder_layer.1} parent=91 // pred_region
          %s2191 = ssub.s32 32, 32
          %2192 = vsyncadd [#allocation9], %s2191
          %s2194 = sshll.u32 [#allocation24], 4
          %s2195 = int_to_ptr.vmem [resolvable:$true] %s2194
          %2197 = dma.vmem_to_hbm [thread:$0]  %s2195, 32, %s19, [#allocation9]
        $region144: #{rnmt_plus_decoder_layer.1} parent=91 // pred_fallthru
          _
        // Predicated region
        $region145: #{rnmt_plus_decoder_layer.1} parent=91 // pred_check
          %p2198 = pneg %p465
        $region146: #{rnmt_plus_decoder_layer.1} parent=91 // pred_check_branch
          %2200 = sbr.rel (%p2198) target = $region148
        $region147: #{rnmt_plus_decoder_layer.1} parent=91 // pred_region
          %2201 = dma.done [#allocation9], 32
        $region148: #{rnmt_plus_decoder_layer.1} parent=91 // pred_fallthru
          _
      $region92: #{rnmt_plus_decoder_layer.1} parent=5 // pred_fallthru
        _
      %p2202 = scmp.le.s32.totalorder 2, %s33
      // Predicated region
      $region149: #{rnmt_plus_decoder_layer.1} parent=5 // pred_check
        %p2203 = pneg %p2202
      $region150: #{rnmt_plus_decoder_layer.1} parent=5 // pred_check_branch
        %2205 = sbr.rel (%p2203) target = $region152
      $region151: #{rnmt_plus_decoder_layer.1} parent=5 // pred_region
        %s2206 = ssub.s32 %s33, 2
        // Predicated region
        $region153: #{rnmt_plus_decoder_layer.1} parent=151 // pred_check
          %p2207 = pneg %p450
        $region154: #{rnmt_plus_decoder_layer.1} parent=151 // pred_check_branch
          %2209 = sbr.rel (%p2207) target = $region156
        $region155: #{rnmt_plus_decoder_layer.1} parent=151 // pred_region
          %p2210 = scmp.lt.s32.totalorder %s39, 1
          %s2211 = scalar_select %p2210, %s39, 1
          %s2212 = smul.addr %s2211, 8
          %s2213 = scalar_lea.vmem %s18, %s2212
        $region156: #{rnmt_plus_decoder_layer.1} parent=151 // pred_fallthru
          _
      $region152: #{rnmt_plus_decoder_layer.1} parent=5 // pred_fallthru
        _
    $region6: #{rnmt_plus_decoder_layer.1} parent=1 // loop_footer
      %s37 = sadd.s32 1, %s33
    $region7: #{rnmt_plus_decoder_layer.1} parent=1 // loop_footer_branch
      %32 = sbr.rel target = $region3
    $region8: #{rnmt_plus_decoder_layer.1} parent=1 // loop_exit
      _
    %2214 = vsyncpa [#allocation8], 1
    %s2215 = scalar_lea.sflag [#allocation8], 1
    %2216 = vsyncpa %s2215, 1
    %2217 = vsyncpa [#allocation11], 1
    %2218 = vsyncpa [#allocation14], 1
    %2219 = vsyncpa [#allocation17], 1
    %2220 = vsyncpa [#allocation20], 1
    %2221 = vsyncpa [#allocation23], 1
    %2222 = vsyncpa [#allocation9], 1
    %s2223 = scalar_lea.sflag [#allocation9], 1
    %2224 = vsyncpa %s2223, 1

</llo_original>
